<compile_context>
chip_gen: v6e
topology: v6e:2x2x1
jax: 0.10.0
libtpu: 0.0.40
codegen_flags: <defaults>
</compile_context>

<pallas_src>
import math

import jax
import jax.numpy as jnp
from jax.experimental import pallas as pl
from jax.experimental.pallas import tpu as pltpu


def _round_up(x: int, m: int) -> int:
    return ((x + m - 1) // m) * m


def _gcn_kernel(a_ref, x_ref, wt_ref, o_ref, acc_ref):
    # a_ref:   (TM, TK)           tile of A_hat           (compute dtype)
    # x_ref:   (TK, Cin_pad)      tile of X               (compute dtype)
    # wt_ref:  (Cin_pad, Cout_pad) pre-transposed weight  (compute dtype, VMEM-resident)
    # o_ref:   (TM, Cout_pad)     output tile             (f32)
    # acc_ref: (TM, Cin_pad)      f32 accumulator for A_hat @ X
    k = pl.program_id(1)

    @pl.when(k == 0)
    def _():
        acc_ref[...] = jnp.zeros_like(acc_ref)

    # Message passing: stream A_hat over the reduction axis, accumulate in f32.
    acc_ref[...] += jnp.dot(
        a_ref[...], x_ref[...], preferred_element_type=jnp.float32
    )

    # Linear projection (no bias) + writeback: exactly once per row tile.
    @pl.when(k == pl.num_programs(1) - 1)
    def _():
        o_ref[...] = jnp.dot(
            acc_ref[...].astype(wt_ref.dtype),
            wt_ref[...],
            preferred_element_type=jnp.float32,
        ).astype(o_ref.dtype)


def graph_convolution(x, a_hat, weight, *, compute_dtype=jnp.bfloat16,
                      tm=256, tk=512):
    """Fused GCN layer forward: (a_hat @ x) @ weight.T

    x:      (N, in_channels)  float32
    a_hat:  (N, N)            float32 dense normalized adjacency
    weight: (out_channels, in_channels) float32  (nn.Linear convention)
    returns (N, out_channels) float32
    """
    n, cin = x.shape
    cout, cin_w = weight.shape
    assert cin == cin_w and a_hat.shape == (n, n)

    # Padded, lane-dense / MXU-friendly sizes.  N is padded so both the row
    # tiling (TM) and reduction tiling (TK) divide it evenly.
    n_pad = _round_up(n, (tm * tk) // math.gcd(tm, tk))
    cin_pad = _round_up(cin, 128)
    cout_pad = _round_up(cout, 128)

    a_p = jnp.zeros((n_pad, n_pad), compute_dtype).at[:n, :n].set(
        a_hat.astype(compute_dtype))
    x_p = jnp.zeros((n_pad, cin_pad), compute_dtype).at[:n, :cin].set(
        x.astype(compute_dtype))
    # Pre-transpose W -> (Cin, Cout): projection becomes a plain (A_hat@X) @ Wt,
    # keeping Cout on the lane axis (no in-kernel transpose, unmasked stores).
    wt_p = jnp.zeros((cin_pad, cout_pad), compute_dtype).at[:cin, :cout].set(
        weight.T.astype(compute_dtype))

    grid = (n_pad // tm, n_pad // tk)

    out_pad = pl.pallas_call(
        _gcn_kernel,
        out_shape=jax.ShapeDtypeStruct((n_pad, cout_pad), jnp.float32),
        grid_spec=pltpu.PrefetchScalarGridSpec(
            num_scalar_prefetch=0,
            grid=grid,
            in_specs=[
                # A_hat tile (TM, TK): varies over both grid axes -> streamed.
                pl.BlockSpec((tm, tk), lambda i, k: (i, k)),
                # X tile (TK, Cin_pad): varies only over k.
                pl.BlockSpec((tk, cin_pad), lambda i, k: (k, 0)),
                # Pre-transposed weight: constant index map -> VMEM-resident.
                pl.BlockSpec((cin_pad, cout_pad), lambda i, k: (0, 0)),
            ],
            out_specs=pl.BlockSpec((tm, cout_pad), lambda i, k: (i, 0)),
            scratch_shapes=[pltpu.VMEM((tm, cin_pad), jnp.float32)],
        ),
        compiler_params=pltpu.CompilerParams(
            # Row tiles are independent (shard across TCs on v7x); reduction
            # axis carries the accumulator, so it must be "arbitrary" and last.
            dimension_semantics=("parallel", "arbitrary"),
        ),
    )(a_p, x_p, wt_p)

    return out_pad[:n, :cout].astype(x.dtype)


def _reference(x, a_hat, weight):
    return (a_hat @ x) @ weight.T


if __name__ == "__main__":
    key = jax.random.PRNGKey(0)
    k_x, k_adj, k_w = jax.random.split(key, 3)

    # Small graph: N nodes, in_channels -> out_channels
    N = 16
    in_channels = 8
    out_channels = 32

    # Node feature matrix X
    x = jax.random.normal(k_x, (N, in_channels), dtype=jnp.float32)

    # Symmetric random adjacency, normalized: A_hat = D^-1/2 (A+I) D^-1/2.
    # (torch uses a sparse tensor; dense has identical spmm semantics.)
    adj_raw = (jax.random.uniform(k_adj, (N, N)) > 0.7).astype(jnp.float32)
    adj = jnp.maximum(adj_raw, adj_raw.T)
    adj = adj + jnp.eye(N, dtype=jnp.float32)
    deg = jnp.sum(adj, axis=1)
    d_inv_sqrt = 1.0 / jnp.sqrt(deg)
    a_hat = adj * d_inv_sqrt[:, None] * d_inv_sqrt[None, :]

    # Weight in nn.Linear convention (out_channels, in_channels).
    bound = 1.0 / jnp.sqrt(jnp.float32(in_channels))
    weight = jax.random.uniform(
        k_w, (out_channels, in_channels), dtype=jnp.float32,
        minval=-bound, maxval=bound)

    ref = _reference(x, a_hat, weight)

    # Default (bf16 inputs, f32 accumulation) performance path.
    out_bf16 = jax.block_until_ready(graph_convolution(x, a_hat, weight))
    assert out_bf16.shape == (N, out_channels)
    assert jnp.allclose(out_bf16, ref, atol=5e-2, rtol=5e-2), \
        "bf16 path mismatch vs reference"

    # Full-precision path for strict numerical validation.
    out_f32 = jax.block_until_ready(
        graph_convolution(x, a_hat, weight, compute_dtype=jnp.float32))
    assert out_f32.shape == (N, out_channels)
    assert jnp.allclose(out_f32, ref, atol=1e-4, rtol=1e-4), \
        "f32 path mismatch vs reference"

    print("KERNEL_OK")
</pallas_src>

<mosaic_0001>
module attributes {stable_mosaic.version = 11 : i64} {
  func.func @_gcn_kernel(%arg0: i32, %arg1: i32, %arg2: memref<256x512xbf16, #tpu.memory_space<vmem>>, %arg3: memref<512x128xbf16, #tpu.memory_space<vmem>>, %arg4: memref<128x128xbf16, #tpu.memory_space<vmem>>, %arg5: memref<256x128xf32, #tpu.memory_space<vmem>>, %arg6: memref<256x128xf32, #tpu.memory_space<vmem>>) attributes {dimension_semantics = [#tpu.dimension_semantics<parallel>, #tpu.dimension_semantics<arbitrary>], iteration_bounds = array<i64: 2, 1>, scalar_prefetch = 0 : i64, scratch_operands = 1 : i64, tpu.core_type = #tpu.core_type<tc>, window_params = [{transform_indices = @transform_0, window_bounds = array<i64: 256, 512>}, {transform_indices = @transform_1, window_bounds = array<i64: 512, 128>}, {pipeline_mode = #tpu.pipeline_mode<synchronous>, transform_indices = @transform_2, window_bounds = array<i64: 128, 128>}, {transform_indices = @transform_3, window_bounds = array<i64: 256, 128>}]} {
    %c0_i32 = arith.constant 0 : i32
    %0 = arith.cmpi eq, %arg1, %c0_i32 : i32
    %1 = arith.extui %0 : i1 to i32
    %c0_i32_0 = arith.constant 0 : i32
    %2 = arith.cmpi ne, %1, %c0_i32_0 : i32
    scf.if %2 {
      %cst_10 = arith.constant 0.000000e+00 : f32
      %12 = vector.broadcast %cst_10 : f32 to vector<256x128xf32>
      %c0_11 = arith.constant 0 : index
      %c0_12 = arith.constant 0 : index
      %13 = vector.load %arg6[%c0_11, %c0_12] : memref<256x128xf32, #tpu.memory_space<vmem>>, vector<256x128xf32>
      tpu.vector_store %arg6[%c0_11, %c0_12], %12 {strides = array<i32>} : memref<256x128xf32, #tpu.memory_space<vmem>>, vector<256x128xf32>,
    } else {
    }
    %c0 = arith.constant 0 : index
    %c0_1 = arith.constant 0 : index
    %3 = vector.load %arg6[%c0, %c0_1] : memref<256x128xf32, #tpu.memory_space<vmem>>, vector<256x128xf32>
    %c0_2 = arith.constant 0 : index
    %c0_3 = arith.constant 0 : index
    %4 = vector.load %arg2[%c0_2, %c0_3] : memref<256x512xbf16, #tpu.memory_space<vmem>>, vector<256x512xbf16>
    %c0_4 = arith.constant 0 : index
    %c0_5 = arith.constant 0 : index
    %5 = vector.load %arg3[%c0_4, %c0_5] : memref<512x128xbf16, #tpu.memory_space<vmem>>, vector<512x128xbf16>
    %cst = arith.constant dense<0.000000e+00> : vector<256x128xf32>
    %6 = tpu.matmul %4, %5, %cst {dimension_numbers = #tpu.dot_dimension_numbers<[1], [0], [0], [1], [0, 0, 1, 1], [], []>} : vector<256x512xbf16>, vector<512x128xbf16>, vector<256x128xf32> -> vector<256x128xf32>
    %7 = arith.addf %3, %6 : vector<256x128xf32>
    %c0_6 = arith.constant 0 : index
    %c0_7 = arith.constant 0 : index
    %8 = vector.load %arg6[%c0_6, %c0_7] : memref<256x128xf32, #tpu.memory_space<vmem>>, vector<256x128xf32>
    tpu.vector_store %arg6[%c0_6, %c0_7], %7 {strides = array<i32>} : memref<256x128xf32, #tpu.memory_space<vmem>>, vector<256x128xf32>,
    %c0_i32_8 = arith.constant 0 : i32
    %9 = arith.cmpi eq, %arg1, %c0_i32_8 : i32
    %10 = arith.extui %9 : i1 to i32
    %c0_i32_9 = arith.constant 0 : i32
    %11 = arith.cmpi ne, %10, %c0_i32_9 : i32
    scf.if %11 {
      %c0_10 = arith.constant 0 : index
      %c0_11 = arith.constant 0 : index
      %12 = vector.load %arg6[%c0_10, %c0_11] : memref<256x128xf32, #tpu.memory_space<vmem>>, vector<256x128xf32>
      %13 = arith.truncf %12 : vector<256x128xf32> to vector<256x128xbf16>
      %c0_12 = arith.constant 0 : index
      %c0_13 = arith.constant 0 : index
      %14 = vector.load %arg4[%c0_12, %c0_13] : memref<128x128xbf16, #tpu.memory_space<vmem>>, vector<128x128xbf16>
      %cst_14 = arith.constant dense<0.000000e+00> : vector<256x128xf32>
      %15 = tpu.matmul %13, %14, %cst_14 {dimension_numbers = #tpu.dot_dimension_numbers<[1], [0], [0], [1], [0, 0, 1, 1], [], []>} : vector<256x128xbf16>, vector<128x128xbf16>, vector<256x128xf32> -> vector<256x128xf32>
      %c0_15 = arith.constant 0 : index
      %c0_16 = arith.constant 0 : index
      %16 = vector.load %arg5[%c0_15, %c0_16] : memref<256x128xf32, #tpu.memory_space<vmem>>, vector<256x128xf32>
      tpu.vector_store %arg5[%c0_15, %c0_16], %15 {strides = array<i32>} : memref<256x128xf32, #tpu.memory_space<vmem>>, vector<256x128xf32>,
    } else {
    }
    return
  }
  func.func @transform_0(%arg0: i32, %arg1: i32) -> (i32, i32) {
    %c0_i32 = arith.constant 0 : i32
    return %arg0, %arg1 : i32, i32
  }
  func.func @transform_1(%arg0: i32, %arg1: i32) -> (i32, i32) {
    %c0_i32 = arith.constant 0 : i32
    %c0_i32_0 = arith.constant 0 : i32
    return %arg1, %c0_i32 : i32, i32
  }
  func.func @transform_2(%arg0: i32, %arg1: i32) -> (i32, i32) {
    %c0_i32 = arith.constant 0 : i32
    %c0_i32_0 = arith.constant 0 : i32
    %c0_i32_1 = arith.constant 0 : i32
    return %c0_i32, %c0_i32_0 : i32, i32
  }
  func.func @transform_3(%arg0: i32, %arg1: i32) -> (i32, i32) {
    %c0_i32 = arith.constant 0 : i32
    %c0_i32_0 = arith.constant 0 : i32
    return %arg0, %c0_i32 : i32, i32
  }
}

</mosaic_0001>

<llo_original>
// kernel: tpu_custom_call.1
$region0: #{tpu_custom_call.1}
  #allocation0 [shape = 'u32[]', space=smem, size = 0x4, offset = 0x4, fixed_abs, tag = 'smem constant byte address 0x4 - core index']
  #allocation1 [shape = 'u32[144,128]{1,0:T(1,128)}', space=vmem, size = 0x12000, scoped, tag = 'internal scratch']
  #allocation2 [shape = 'f32[256,128]{1,0:T(8,128)}', space=vmem, size = 0x20000, scoped, tag = 'scratch operand']
  %s0 = inlined_call_operand.hbm [shape: bf16[512,512], index: 0, kind: input, shape index: {}]
  %s1 = inlined_call_operand.hbm [shape: bf16[512,128], index: 1, kind: input, shape index: {}]
  %s2 = inlined_call_operand.hbm [shape: bf16[128,128], index: 2, kind: input, shape index: {}]
  %s3 = inlined_call_operand.hbm [shape: f32[512,128], index: 3, kind: output, shape index: {}]
  %s4 = sld [smem:[#allocation0]]
  $region65: #{tpu_custom_call.1} parent=0
    _
  %s6 = ssub.s32 1, %s4
  %s7 = scalar_select 0, %s6, %s4
  $region1: #{tpu_custom_call.1} parent=0
    #allocation3 [shape = 'u8[524288]{0}', space=vmem, size = 0x80000, scoped, tag = 'input window, operand 0']
    #allocation4 [shape = 's32[2]{0}', space=sflag, size = 0x8, scoped, tag = 'scoped memory for tpu_custom_call.1']
    #allocation5 [shape = 's32[2]{0}', space=sflag, size = 0x8, scoped, tag = 'scoped memory for tpu_custom_call.1']
    #allocation6 [shape = 'u8[131072]{0}', space=vmem, size = 0x20000, scoped, tag = 'input window, operand 1, single buffered']
    #allocation7 [shape = 's32[1]{0}', space=sflag, size = 0x4, scoped, tag = 'scoped memory for tpu_custom_call.1']
    #allocation8 [shape = 'u8[32768]{0}', space=vmem, size = 0x8000, scoped, tag = 'input window, operand 2, single buffered']
    #allocation9 [shape = 'u8[262144]{0}', space=vmem, size = 0x40000, scoped, tag = 'output window, operand 0']
    %8 = vsyncpa [#allocation4], 0
    %s9 = scalar_lea.sflag [#allocation4], 1
    %10 = vsyncpa %s9, 0
    %11 = vsyncpa [#allocation7], 0
    %12 = vsyncpa [#allocation5], 0
    %s13 = scalar_lea.sflag [#allocation5], 1
    %14 = vsyncpa %s13, 0
    loop: start=0, step=1, limit=4
    $region2: #{tpu_custom_call.1} parent=1 // loop_pre_header
      _
    $region3: #{tpu_custom_call.1} parent=1 // loop_header
      %s16 = sphi 0, %s20
      %p17 = scmp.ge.s32.totalorder %s16, 4
      %s23 = sphi 0, %s35
      %s24 = sphi 0, %s31
      %s25 = sphi 0, %s23
      %s26 = sphi 0, %s24
      %s27 = sphi 0, %s25
      %s28 = sphi 0, %s26
      %s40 = sphi 0, %s42
      %s43 = sphi 0, %s40
      %s44 = sphi 0, %s43
      %s60 = sphi 0, %s44
      %s66 = sphi 0, %s68
      %s69 = sphi 0, %s66
      %s70 = sphi 0, %s69
      %s86 = sphi 0, %s70
      %s90 = sphi 0, %s90
      %s92 = sphi 0, %s90
      %s93 = sphi 0, %s92
      %s107 = sphi 0, %s93
      %s113 = sphi 0, %s115
      %s116 = sphi 0, %s113
      %s117 = sphi 0, %s116
      %s133 = sphi 0, %s117
    $region4: #{tpu_custom_call.1} parent=1 // loop_header_branch
      %19 = sbr.rel (%p17) target = $region8
    $region5: #{tpu_custom_call.1} parent=1 // loop_body
      %s21 = ssub.s32 %s16, 1
      %s22 = ssub.s32 %s16, 2
      %s29 = sadd.s32 1, %s24
      %p30 = scmp.ge.s32.totalorder %s29, 1
      %s31 = scalar_select %p30, 0, %s29
      %s32 = sadd.s32 1, %s23
      %s33 = scalar_select %p30, %s32, %s23
      %p34 = scmp.ge.s32.totalorder %s33, 2
      %s35 = scalar_select %p34, 0, %s33
      %s36 = ssub.s32 %s23, %s35
      %s37 = ssub.s32 %s24, %s31
      %s38 = sor.u32 %s36, %s37
      %p39 = scmp.eq.s32.totalorder %s38, 0
      %s41 = sadd.s32 %s40, 1
      %s42 = scalar_select %p39, %s40, %s41
      %p45 = pneg %p39
      %p46 = scmp.eq.s32.totalorder %s16, 1
      %p47 = por %p45, %p46
      %p48 = scmp.ne.s32.totalorder %s40, %s43
      %p49 = scmp.eq.s32.totalorder %s16, 0
      %p50 = por %p48, %p49
      %p51 = scmp.ne.s32.totalorder %s40, %s43
      %p52 = scmp.eq.s32.totalorder %s21, 1
      %p53 = por %p51, %p52
      %p54 = scmp.ne.s32.totalorder %s43, %s44
      %p55 = scmp.eq.s32.totalorder %s21, 0
      %p56 = por %p54, %p55
      %p57 = scmp.ne.s32.totalorder %s43, %s44
      %p58 = scmp.eq.s32.totalorder %s22, 1
      %p59 = por %p57, %p58
      %p61 = scmp.ne.s32.totalorder %s44, %s60
      %p62 = scmp.eq.s32.totalorder %s22, 0
      %p63 = por %p61, %p62
      %s64 = ssub.s32 %s24, %s31
      %p65 = scmp.eq.s32.totalorder %s64, 0
      %s67 = sadd.s32 %s66, 1
      %s68 = scalar_select %p65, %s66, %s67
      %p71 = pneg %p65
      %p72 = scmp.eq.s32.totalorder %s16, 1
      %p73 = por %p71, %p72
      %p74 = scmp.ne.s32.totalorder %s66, %s69
      %p75 = scmp.eq.s32.totalorder %s16, 0
      %p76 = por %p74, %p75
      %p77 = scmp.ne.s32.totalorder %s66, %s69
      %p78 = scmp.eq.s32.totalorder %s21, 1
      %p79 = por %p77, %p78
      %p80 = scmp.ne.s32.totalorder %s69, %s70
      %p81 = scmp.eq.s32.totalorder %s21, 0
      %p82 = por %p80, %p81
      %p83 = scmp.ne.s32.totalorder %s69, %s70
      %p84 = scmp.eq.s32.totalorder %s22, 1
      %p85 = por %p83, %p84
      %p87 = scmp.ne.s32.totalorder %s70, %s86
      %p88 = scmp.eq.s32.totalorder %s22, 0
      %p89 = por %p87, %p88
      %s91 = sadd.s32 %s90, 1
      %p94 = scmp.eq.s32.totalorder %s16, 1
      %p95 = scmp.ne.s32.totalorder %s90, %s92
      %p96 = scmp.eq.s32.totalorder %s16, 0
      %p97 = por %p95, %p96
      %p98 = scmp.ne.s32.totalorder %s90, %s92
      %p99 = scmp.eq.s32.totalorder %s21, 1
      %p100 = por %p98, %p99
      %p101 = scmp.ne.s32.totalorder %s92, %s93
      %p102 = scmp.eq.s32.totalorder %s21, 0
      %p103 = por %p101, %p102
      %p104 = scmp.ne.s32.totalorder %s92, %s93
      %p105 = scmp.eq.s32.totalorder %s22, 1
      %p106 = por %p104, %p105
      %p108 = scmp.ne.s32.totalorder %s93, %s107
      %p109 = scmp.eq.s32.totalorder %s22, 0
      %p110 = por %p108, %p109
      %s111 = ssub.s32 %s23, %s35
      %p112 = scmp.eq.s32.totalorder %s111, 0
      %s114 = sadd.s32 %s113, 1
      %s115 = scalar_select %p112, %s113, %s114
      %p118 = pneg %p112
      %p119 = scmp.eq.s32.totalorder %s16, 1
      %p120 = por %p118, %p119
      %p121 = scmp.ne.s32.totalorder %s113, %s116
      %p122 = scmp.eq.s32.totalorder %s16, 0
      %p123 = por %p121, %p122
      %p124 = scmp.ne.s32.totalorder %s113, %s116
      %p125 = scmp.eq.s32.totalorder %s21, 1
      %p126 = por %p124, %p125
      %p127 = scmp.ne.s32.totalorder %s116, %s117
      %p128 = scmp.eq.s32.totalorder %s21, 0
      %p129 = por %p127, %p128
      %p130 = scmp.ne.s32.totalorder %s116, %s117
      %p131 = scmp.eq.s32.totalorder %s22, 1
      %p132 = por %p130, %p131
      %p134 = scmp.ne.s32.totalorder %s117, %s133
      %p135 = scmp.eq.s32.totalorder %s22, 0
      %p136 = por %p134, %p135
      %p137 = scmp.le.s32.totalorder 1, %s16
      %p138 = scmp.lt.s32.totalorder %s16, 3
      %p139 = pnand %p137, %p138
      %p140 = pneg %p139
      // Predicated region
      $region9: #{tpu_custom_call.1} parent=5 // pred_check
        _
      $region10: #{tpu_custom_call.1} parent=5 // pred_check_branch
        %142 = sbr.rel (%p139) target = $region12
      $region11: #{tpu_custom_call.1} parent=5 // pred_region
        %s143 = ssub.s32 %s16, 1
        // Predicated region
        $region13: #{tpu_custom_call.1} parent=11 // pred_check
          %p144 = pneg %p82
        $region14: #{tpu_custom_call.1} parent=11 // pred_check_branch
          %146 = sbr.rel (%p144) target = $region16
        $region15: #{tpu_custom_call.1} parent=11 // pred_region
          %s147 = smul.u32 64, %s26
          %s149 = ssub.s32 4096, 4096
          %150 = vsyncadd [#allocation7], %s149
          %s151 = smul.addr %s147, 64
          %s152 = scalar_lea.hbm %s1, %s151
          %s153 = sshll.u32 [#allocation6], 4
          %s154 = int_to_ptr.vmem [resolvable:$true] %s153
          %159 = dma.hbm_to_vmem [thread:$0]  %s152, 4096, %s154, [#allocation7], 64, 64, 4
        $region16: #{tpu_custom_call.1} parent=11 // pred_fallthru
          _
        // Predicated region
        $region17: #{tpu_custom_call.1} parent=11 // pred_check
          %p160 = pneg %p103
        $region18: #{tpu_custom_call.1} parent=11 // pred_check_branch
          %162 = sbr.rel (%p160) target = $region20
        $region19: #{tpu_custom_call.1} parent=11 // pred_region
          %s164 = ssub.s32 1024, 1024
          %165 = vsyncadd [#allocation7], %s164
          %s166 = sshll.u32 [#allocation8], 4
          %s167 = int_to_ptr.vmem [resolvable:$true] %s166
          %172 = dma.hbm_to_vmem [thread:$0]  %s2, 1024, %s167, [#allocation7], 64, 64, 4
        $region20: #{tpu_custom_call.1} parent=11 // pred_fallthru
          _
      $region12: #{tpu_custom_call.1} parent=5 // pred_fallthru
        _
      %p173 = scmp.lt.s32.totalorder %s16, 2
      // Predicated region
      $region21: #{tpu_custom_call.1} parent=5 // pred_check
        %p174 = pneg %p173
      $region22: #{tpu_custom_call.1} parent=5 // pred_check_branch
        %176 = sbr.rel (%p174) target = $region24
      $region23: #{tpu_custom_call.1} parent=5 // pred_region
        // Predicated region
        $region25: #{tpu_custom_call.1} parent=23 // pred_check
          %p177 = pneg %p50
        $region26: #{tpu_custom_call.1} parent=23 // pred_check_branch
          %179 = sbr.rel (%p177) target = $region28
        $region27: #{tpu_custom_call.1} parent=23 // pred_region
          %s180 = sand.u32 %s40, 1
          %s181 = scalar_lea.sflag [#allocation4], %s180
          %s182 = sand.u32 %s40, 1
          %s183 = smul.addr %s182, 512
          %s184 = scalar_lea.vmem [#allocation3], %s183
          %s185 = smul.u32 32, %s23
          %s186 = smul.u32 4, %s24
          %s188 = ssub.s32 8192, 8192
          %189 = vsyncadd %s181, %s188
          %s190 = smul.addr %s185, 4
          %s191 = sadd.s32 %s186, %s190
          %s192 = smul.addr %s191, 64
          %s193 = scalar_lea.hbm %s0, %s192
          %s194 = sshll.u32 %s184, 4
          %s195 = int_to_ptr.vmem [resolvable:$true] %s194
          %200 = dma.hbm_to_vmem [thread:$0]  %s193, 8192, %s195, %s181, 256, 256, 16
        $region28: #{tpu_custom_call.1} parent=23 // pred_fallthru
          _
      $region24: #{tpu_custom_call.1} parent=5 // pred_fallthru
        _
      %p201 = scmp.le.s32.totalorder 1, %s16
      %p202 = scmp.lt.s32.totalorder %s16, 3
      %p203 = pnand %p201, %p202
      %p204 = pneg %p203
      // Predicated region
      $region29: #{tpu_custom_call.1} parent=5 // pred_check
        _
      $region30: #{tpu_custom_call.1} parent=5 // pred_check_branch
        %206 = sbr.rel (%p203) target = $region32
      $region31: #{tpu_custom_call.1} parent=5 // pred_region
        %s207 = ssub.s32 %s16, 1
        %s208 = sand.u32 %s43, 1
        %s209 = scalar_lea.sflag [#allocation4], %s208
        %s210 = sand.u32 %s43, 1
        %s211 = smul.addr %s210, 512
        %s212 = scalar_lea.vmem [#allocation3], %s211
        // Predicated region
        $region33: #{tpu_custom_call.1} parent=31 // pred_check
          %p213 = pneg %p56
        $region34: #{tpu_custom_call.1} parent=31 // pred_check_branch
          %215 = sbr.rel (%p213) target = $region36
        $region35: #{tpu_custom_call.1} parent=31 // pred_region
          %216 = dma.done %s209, 8192
        $region36: #{tpu_custom_call.1} parent=31 // pred_fallthru
          _
        // Predicated region
        $region37: #{tpu_custom_call.1} parent=31 // pred_check
          %p217 = pneg %p82
        $region38: #{tpu_custom_call.1} parent=31 // pred_check_branch
          %219 = sbr.rel (%p217) target = $region40
        $region39: #{tpu_custom_call.1} parent=31 // pred_region
          %220 = dma.done [#allocation7], 4096
        $region40: #{tpu_custom_call.1} parent=31 // pred_fallthru
          _
        // Predicated region
        $region41: #{tpu_custom_call.1} parent=31 // pred_check
          %p221 = pneg %p103
        $region42: #{tpu_custom_call.1} parent=31 // pred_check_branch
          %223 = sbr.rel (%p221) target = $region44
        $region43: #{tpu_custom_call.1} parent=31 // pred_region
          %224 = dma.done [#allocation7], 1024
        $region44: #{tpu_custom_call.1} parent=31 // pred_fallthru
          _
        %s225 = sand.u32 %s43, 1
        %s226 = scalar_lea.sflag [#allocation4], %s225
        %s227 = sand.u32 %s43, 1
        %s228 = smul.addr %s227, 512
        %s229 = scalar_lea.vmem [#allocation3], %s228
        %p230 = pneg %p56
        %p231 = pneg %p53
        %p232 = pneg %p82
        %p233 = pneg %p79
        %p234 = pneg %p103
        %p235 = pneg %p100
        %p236 = pneg %p129
        %p237 = pneg %p126
        %s238 = sand.u32 %s116, 1
        %s239 = scalar_lea.sflag [#allocation5], %s238
        %s240 = sand.u32 %s116, 1
        %s241 = smul.addr %s240, 256
        %s242 = scalar_lea.vmem [#allocation9], %s241
        %s243 = smul.u32 32, %s25
        %s244 = smul.u32 4, %s26
        %s245 = smul.u32 64, %s26
        %s246 = smul.u32 32, %s25
        %p248 = scmp.eq.s32.totalorder %s26, 0
        // Predicated region
        $region45: #{tpu_custom_call.1} parent=31 // pred_check
          %p249 = pneg %p248
        $region46: #{tpu_custom_call.1} parent=31 // pred_check_branch
          %251 = sbr.rel (%p249) target = $region48
        $region47: #{tpu_custom_call.1} parent=31 // pred_region
          %252 = vst [vmem:[#allocation2] sm:$0xff] 0.0
          %253 = vst [vmem:[#allocation2 + $0x8] sm:$0xff] 0.0
          %254 = vst [vmem:[#allocation2 + $0x10] sm:$0xff] 0.0
          %255 = vst [vmem:[#allocation2 + $0x18] sm:$0xff] 0.0
          %256 = vst [vmem:[#allocation2 + $0x20] sm:$0xff] 0.0
          %257 = vst [vmem:[#allocation2 + $0x28] sm:$0xff] 0.0
          %258 = vst [vmem:[#allocation2 + $0x30] sm:$0xff] 0.0
          %259 = vst [vmem:[#allocation2 + $0x38] sm:$0xff] 0.0
          %260 = vst [vmem:[#allocation2 + $0x40] sm:$0xff] 0.0
          %261 = vst [vmem:[#allocation2 + $0x48] sm:$0xff] 0.0
          %262 = vst [vmem:[#allocation2 + $0x50] sm:$0xff] 0.0
          %263 = vst [vmem:[#allocation2 + $0x58] sm:$0xff] 0.0
          %264 = vst [vmem:[#allocation2 + $0x60] sm:$0xff] 0.0
          %265 = vst [vmem:[#allocation2 + $0x68] sm:$0xff] 0.0
          %266 = vst [vmem:[#allocation2 + $0x70] sm:$0xff] 0.0
          %267 = vst [vmem:[#allocation2 + $0x78] sm:$0xff] 0.0
          %268 = vst [vmem:[#allocation2 + $0x80] sm:$0xff] 0.0
          %269 = vst [vmem:[#allocation2 + $0x88] sm:$0xff] 0.0
          %270 = vst [vmem:[#allocation2 + $0x90] sm:$0xff] 0.0
          %271 = vst [vmem:[#allocation2 + $0x98] sm:$0xff] 0.0
          %272 = vst [vmem:[#allocation2 + $0xa0] sm:$0xff] 0.0
          %273 = vst [vmem:[#allocation2 + $0xa8] sm:$0xff] 0.0
          %274 = vst [vmem:[#allocation2 + $0xb0] sm:$0xff] 0.0
          %275 = vst [vmem:[#allocation2 + $0xb8] sm:$0xff] 0.0
          %276 = vst [vmem:[#allocation2 + $0xc0] sm:$0xff] 0.0
          %277 = vst [vmem:[#allocation2 + $0xc8] sm:$0xff] 0.0
          %278 = vst [vmem:[#allocation2 + $0xd0] sm:$0xff] 0.0
          %279 = vst [vmem:[#allocation2 + $0xd8] sm:$0xff] 0.0
          %280 = vst [vmem:[#allocation2 + $0xe0] sm:$0xff] 0.0
          %281 = vst [vmem:[#allocation2 + $0xe8] sm:$0xff] 0.0
          %282 = vst [vmem:[#allocation2 + $0xf0] sm:$0xff] 0.0
          %283 = vst [vmem:[#allocation2 + $0xf8] sm:$0xff] 0.0
        $region48: #{tpu_custom_call.1} parent=31 // pred_fallthru
          _
        %v284 = vld [vmem:[#allocation2] sm:$0xff]
        %v285 = vld [vmem:[#allocation2 + $0x8] sm:$0xff]
        %v286 = vld [vmem:[#allocation2 + $0x10] sm:$0xff]
        %v287 = vld [vmem:[#allocation2 + $0x18] sm:$0xff]
        %v288 = vld [vmem:[#allocation2 + $0x20] sm:$0xff]
        %v289 = vld [vmem:[#allocation2 + $0x28] sm:$0xff]
        %v290 = vld [vmem:[#allocation2 + $0x30] sm:$0xff]
        %v291 = vld [vmem:[#allocation2 + $0x38] sm:$0xff]
        %v292 = vld [vmem:[#allocation2 + $0x40] sm:$0xff]
        %v293 = vld [vmem:[#allocation2 + $0x48] sm:$0xff]
        %v294 = vld [vmem:[#allocation2 + $0x50] sm:$0xff]
        %v295 = vld [vmem:[#allocation2 + $0x58] sm:$0xff]
        %v296 = vld [vmem:[#allocation2 + $0x60] sm:$0xff]
        %v297 = vld [vmem:[#allocation2 + $0x68] sm:$0xff]
        %v298 = vld [vmem:[#allocation2 + $0x70] sm:$0xff]
        %v299 = vld [vmem:[#allocation2 + $0x78] sm:$0xff]
        %v300 = vld [vmem:[#allocation2 + $0x80] sm:$0xff]
        %v301 = vld [vmem:[#allocation2 + $0x88] sm:$0xff]
        %v302 = vld [vmem:[#allocation2 + $0x90] sm:$0xff]
        %v303 = vld [vmem:[#allocation2 + $0x98] sm:$0xff]
        %v304 = vld [vmem:[#allocation2 + $0xa0] sm:$0xff]
        %v305 = vld [vmem:[#allocation2 + $0xa8] sm:$0xff]
        %v306 = vld [vmem:[#allocation2 + $0xb0] sm:$0xff]
        %v307 = vld [vmem:[#allocation2 + $0xb8] sm:$0xff]
        %v308 = vld [vmem:[#allocation2 + $0xc0] sm:$0xff]
        %v309 = vld [vmem:[#allocation2 + $0xc8] sm:$0xff]
        %v310 = vld [vmem:[#allocation2 + $0xd0] sm:$0xff]
        %v311 = vld [vmem:[#allocation2 + $0xd8] sm:$0xff]
        %v312 = vld [vmem:[#allocation2 + $0xe0] sm:$0xff]
        %v313 = vld [vmem:[#allocation2 + $0xe8] sm:$0xff]
        %v314 = vld [vmem:[#allocation2 + $0xf0] sm:$0xff]
        %v315 = vld [vmem:[#allocation2 + $0xf8] sm:$0xff]
        %v316 = vld [vmem:[%s212] sm:$0xff]
        %v317 = vld [vmem:[%s212 + $0x8] sm:$0xff]
        %v318 = vld [vmem:[%s212 + $0x10] sm:$0xff]
        %v319 = vld [vmem:[%s212 + $0x18] sm:$0xff]
        %v320 = vld [vmem:[%s212 + $0x20] sm:$0xff]
        %v321 = vld [vmem:[%s212 + $0x28] sm:$0xff]
        %v322 = vld [vmem:[%s212 + $0x30] sm:$0xff]
        %v323 = vld [vmem:[%s212 + $0x38] sm:$0xff]
        %v324 = vld [vmem:[%s212 + $0x40] sm:$0xff]
        %v325 = vld [vmem:[%s212 + $0x48] sm:$0xff]
        %v326 = vld [vmem:[%s212 + $0x50] sm:$0xff]
        %v327 = vld [vmem:[%s212 + $0x58] sm:$0xff]
        %v328 = vld [vmem:[%s212 + $0x60] sm:$0xff]
        %v329 = vld [vmem:[%s212 + $0x68] sm:$0xff]
        %v330 = vld [vmem:[%s212 + $0x70] sm:$0xff]
        %v331 = vld [vmem:[%s212 + $0x78] sm:$0xff]
        %v332 = vld [vmem:[%s212 + $0x80] sm:$0xff]
        %v333 = vld [vmem:[%s212 + $0x88] sm:$0xff]
        %v334 = vld [vmem:[%s212 + $0x90] sm:$0xff]
        %v335 = vld [vmem:[%s212 + $0x98] sm:$0xff]
        %v336 = vld [vmem:[%s212 + $0xa0] sm:$0xff]
        %v337 = vld [vmem:[%s212 + $0xa8] sm:$0xff]
        %v338 = vld [vmem:[%s212 + $0xb0] sm:$0xff]
        %v339 = vld [vmem:[%s212 + $0xb8] sm:$0xff]
        %v340 = vld [vmem:[%s212 + $0xc0] sm:$0xff]
        %v341 = vld [vmem:[%s212 + $0xc8] sm:$0xff]
        %v342 = vld [vmem:[%s212 + $0xd0] sm:$0xff]
        %v343 = vld [vmem:[%s212 + $0xd8] sm:$0xff]
        %v344 = vld [vmem:[%s212 + $0xe0] sm:$0xff]
        %v345 = vld [vmem:[%s212 + $0xe8] sm:$0xff]
        %v346 = vld [vmem:[%s212 + $0xf0] sm:$0xff]
        %v347 = vld [vmem:[%s212 + $0xf8] sm:$0xff]
        %v348 = vld [vmem:[%s212 + $0x100] sm:$0xff]
        %v349 = vld [vmem:[%s212 + $0x108] sm:$0xff]
        %v350 = vld [vmem:[%s212 + $0x110] sm:$0xff]
        %v351 = vld [vmem:[%s212 + $0x118] sm:$0xff]
        %v352 = vld [vmem:[%s212 + $0x120] sm:$0xff]
        %v353 = vld [vmem:[%s212 + $0x128] sm:$0xff]
        %v354 = vld [vmem:[%s212 + $0x130] sm:$0xff]
        %v355 = vld [vmem:[%s212 + $0x138] sm:$0xff]
        %v356 = vld [vmem:[%s212 + $0x140] sm:$0xff]
        %v357 = vld [vmem:[%s212 + $0x148] sm:$0xff]
        %v358 = vld [vmem:[%s212 + $0x150] sm:$0xff]
        %v359 = vld [vmem:[%s212 + $0x158] sm:$0xff]
        %v360 = vld [vmem:[%s212 + $0x160] sm:$0xff]
        %v361 = vld [vmem:[%s212 + $0x168] sm:$0xff]
        %v362 = vld [vmem:[%s212 + $0x170] sm:$0xff]
        %v363 = vld [vmem:[%s212 + $0x178] sm:$0xff]
        %v364 = vld [vmem:[%s212 + $0x180] sm:$0xff]
        %v365 = vld [vmem:[%s212 + $0x188] sm:$0xff]
        %v366 = vld [vmem:[%s212 + $0x190] sm:$0xff]
        %v367 = vld [vmem:[%s212 + $0x198] sm:$0xff]
        %v368 = vld [vmem:[%s212 + $0x1a0] sm:$0xff]
        %v369 = vld [vmem:[%s212 + $0x1a8] sm:$0xff]
        %v370 = vld [vmem:[%s212 + $0x1b0] sm:$0xff]
        %v371 = vld [vmem:[%s212 + $0x1b8] sm:$0xff]
        %v372 = vld [vmem:[%s212 + $0x1c0] sm:$0xff]
        %v373 = vld [vmem:[%s212 + $0x1c8] sm:$0xff]
        %v374 = vld [vmem:[%s212 + $0x1d0] sm:$0xff]
        %v375 = vld [vmem:[%s212 + $0x1d8] sm:$0xff]
        %v376 = vld [vmem:[%s212 + $0x1e0] sm:$0xff]
        %v377 = vld [vmem:[%s212 + $0x1e8] sm:$0xff]
        %v378 = vld [vmem:[%s212 + $0x1f0] sm:$0xff]
        %v379 = vld [vmem:[%s212 + $0x1f8] sm:$0xff]
        %v380 = vld [vmem:[#allocation6] sm:$0xf]
        %v381 = vld [vmem:[#allocation6 + $0x4] sm:$0xf]
        %v382 = vld [vmem:[#allocation6 + $0x8] sm:$0xf]
        %v383 = vld [vmem:[#allocation6 + $0xc] sm:$0xf]
        %v384 = vld [vmem:[#allocation6 + $0x10] sm:$0xf]
        %v385 = vld [vmem:[#allocation6 + $0x14] sm:$0xf]
        %v386 = vld [vmem:[#allocation6 + $0x18] sm:$0xf]
        %v387 = vld [vmem:[#allocation6 + $0x1c] sm:$0xf]
        %v388 = vld [vmem:[#allocation6 + $0x20] sm:$0xf]
        %v389 = vld [vmem:[#allocation6 + $0x24] sm:$0xf]
        %v390 = vld [vmem:[#allocation6 + $0x28] sm:$0xf]
        %v391 = vld [vmem:[#allocation6 + $0x2c] sm:$0xf]
        %v392 = vld [vmem:[#allocation6 + $0x30] sm:$0xf]
        %v393 = vld [vmem:[#allocation6 + $0x34] sm:$0xf]
        %v394 = vld [vmem:[#allocation6 + $0x38] sm:$0xf]
        %v395 = vld [vmem:[#allocation6 + $0x3c] sm:$0xf]
        %v396 = vld [vmem:[#allocation6 + $0x40] sm:$0xf]
        %v397 = vld [vmem:[#allocation6 + $0x44] sm:$0xf]
        %v398 = vld [vmem:[#allocation6 + $0x48] sm:$0xf]
        %v399 = vld [vmem:[#allocation6 + $0x4c] sm:$0xf]
        %v400 = vld [vmem:[#allocation6 + $0x50] sm:$0xf]
        %v401 = vld [vmem:[#allocation6 + $0x54] sm:$0xf]
        %v402 = vld [vmem:[#allocation6 + $0x58] sm:$0xf]
        %v403 = vld [vmem:[#allocation6 + $0x5c] sm:$0xf]
        %v404 = vld [vmem:[#allocation6 + $0x60] sm:$0xf]
        %v405 = vld [vmem:[#allocation6 + $0x64] sm:$0xf]
        %v406 = vld [vmem:[#allocation6 + $0x68] sm:$0xf]
        %v407 = vld [vmem:[#allocation6 + $0x6c] sm:$0xf]
        %v408 = vld [vmem:[#allocation6 + $0x70] sm:$0xf]
        %v409 = vld [vmem:[#allocation6 + $0x74] sm:$0xf]
        %v410 = vld [vmem:[#allocation6 + $0x78] sm:$0xf]
        %v411 = vld [vmem:[#allocation6 + $0x7c] sm:$0xf]
        %v412 = vld [vmem:[#allocation6 + $0x80] sm:$0xf]
        %v413 = vld [vmem:[#allocation6 + $0x84] sm:$0xf]
        %v414 = vld [vmem:[#allocation6 + $0x88] sm:$0xf]
        %v415 = vld [vmem:[#allocation6 + $0x8c] sm:$0xf]
        %v416 = vld [vmem:[#allocation6 + $0x90] sm:$0xf]
        %v417 = vld [vmem:[#allocation6 + $0x94] sm:$0xf]
        %v418 = vld [vmem:[#allocation6 + $0x98] sm:$0xf]
        %v419 = vld [vmem:[#allocation6 + $0x9c] sm:$0xf]
        %v420 = vld [vmem:[#allocation6 + $0xa0] sm:$0xf]
        %v421 = vld [vmem:[#allocation6 + $0xa4] sm:$0xf]
        %v422 = vld [vmem:[#allocation6 + $0xa8] sm:$0xf]
        %v423 = vld [vmem:[#allocation6 + $0xac] sm:$0xf]
        %v424 = vld [vmem:[#allocation6 + $0xb0] sm:$0xf]
        %v425 = vld [vmem:[#allocation6 + $0xb4] sm:$0xf]
        %v426 = vld [vmem:[#allocation6 + $0xb8] sm:$0xf]
        %v427 = vld [vmem:[#allocation6 + $0xbc] sm:$0xf]
        %v428 = vld [vmem:[#allocation6 + $0xc0] sm:$0xf]
        %v429 = vld [vmem:[#allocation6 + $0xc4] sm:$0xf]
        %v430 = vld [vmem:[#allocation6 + $0xc8] sm:$0xf]
        %v431 = vld [vmem:[#allocation6 + $0xcc] sm:$0xf]
        %v432 = vld [vmem:[#allocation6 + $0xd0] sm:$0xf]
        %v433 = vld [vmem:[#allocation6 + $0xd4] sm:$0xf]
        %v434 = vld [vmem:[#allocation6 + $0xd8] sm:$0xf]
        %v435 = vld [vmem:[#allocation6 + $0xdc] sm:$0xf]
        %v436 = vld [vmem:[#allocation6 + $0xe0] sm:$0xf]
        %v437 = vld [vmem:[#allocation6 + $0xe4] sm:$0xf]
        %v438 = vld [vmem:[#allocation6 + $0xe8] sm:$0xf]
        %v439 = vld [vmem:[#allocation6 + $0xec] sm:$0xf]
        %v440 = vld [vmem:[#allocation6 + $0xf0] sm:$0xf]
        %v441 = vld [vmem:[#allocation6 + $0xf4] sm:$0xf]
        %v442 = vld [vmem:[#allocation6 + $0xf8] sm:$0xf]
        %v443 = vld [vmem:[#allocation6 + $0xfc] sm:$0xf]
        %v508 = vunpack.c.l.b16 %v316
        %v509 = vunpack.c.h.b16 %v316
        %v510 = vunpack.c.l.b16 %v317
        %v511 = vunpack.c.h.b16 %v317
        %v512 = vunpack.c.l.b16 %v318
        %v513 = vunpack.c.h.b16 %v318
        %v514 = vunpack.c.l.b16 %v319
        %v515 = vunpack.c.h.b16 %v319
        %v516 = vunpack.c.l.b16 %v320
        %v517 = vunpack.c.h.b16 %v320
        %v518 = vunpack.c.l.b16 %v321
        %v519 = vunpack.c.h.b16 %v321
        %v520 = vunpack.c.l.b16 %v322
        %v521 = vunpack.c.h.b16 %v322
        %v522 = vunpack.c.l.b16 %v323
        %v523 = vunpack.c.h.b16 %v323
        %v524 = vunpack.c.l.b16 %v324
        %v525 = vunpack.c.h.b16 %v324
        %v526 = vunpack.c.l.b16 %v325
        %v527 = vunpack.c.h.b16 %v325
        %v528 = vunpack.c.l.b16 %v326
        %v529 = vunpack.c.h.b16 %v326
        %v530 = vunpack.c.l.b16 %v327
        %v531 = vunpack.c.h.b16 %v327
        %v532 = vunpack.c.l.b16 %v328
        %v533 = vunpack.c.h.b16 %v328
        %v534 = vunpack.c.l.b16 %v329
        %v535 = vunpack.c.h.b16 %v329
        %v536 = vunpack.c.l.b16 %v330
        %v537 = vunpack.c.h.b16 %v330
        %v538 = vunpack.c.l.b16 %v331
        %v539 = vunpack.c.h.b16 %v331
        %v540 = vunpack.c.l.b16 %v332
        %v541 = vunpack.c.h.b16 %v332
        %v542 = vunpack.c.l.b16 %v333
        %v543 = vunpack.c.h.b16 %v333
        %v544 = vunpack.c.l.b16 %v334
        %v545 = vunpack.c.h.b16 %v334
        %v546 = vunpack.c.l.b16 %v335
        %v547 = vunpack.c.h.b16 %v335
        %v548 = vunpack.c.l.b16 %v336
        %v549 = vunpack.c.h.b16 %v336
        %v550 = vunpack.c.l.b16 %v337
        %v551 = vunpack.c.h.b16 %v337
        %v552 = vunpack.c.l.b16 %v338
        %v553 = vunpack.c.h.b16 %v338
        %v554 = vunpack.c.l.b16 %v339
        %v555 = vunpack.c.h.b16 %v339
        %v556 = vunpack.c.l.b16 %v340
        %v557 = vunpack.c.h.b16 %v340
        %v558 = vunpack.c.l.b16 %v341
        %v559 = vunpack.c.h.b16 %v341
        %v560 = vunpack.c.l.b16 %v342
        %v561 = vunpack.c.h.b16 %v342
        %v562 = vunpack.c.l.b16 %v343
        %v563 = vunpack.c.h.b16 %v343
        %v564 = vunpack.c.l.b16 %v344
        %v565 = vunpack.c.h.b16 %v344
        %v566 = vunpack.c.l.b16 %v345
        %v567 = vunpack.c.h.b16 %v345
        %v568 = vunpack.c.l.b16 %v346
        %v569 = vunpack.c.h.b16 %v346
        %v570 = vunpack.c.l.b16 %v347
        %v571 = vunpack.c.h.b16 %v347
        %v572 = vunpack.c.l.b16 %v348
        %v573 = vunpack.c.h.b16 %v348
        %v574 = vunpack.c.l.b16 %v349
        %v575 = vunpack.c.h.b16 %v349
        %v576 = vunpack.c.l.b16 %v350
        %v577 = vunpack.c.h.b16 %v350
        %v578 = vunpack.c.l.b16 %v351
        %v579 = vunpack.c.h.b16 %v351
        %v580 = vunpack.c.l.b16 %v352
        %v581 = vunpack.c.h.b16 %v352
        %v582 = vunpack.c.l.b16 %v353
        %v583 = vunpack.c.h.b16 %v353
        %v584 = vunpack.c.l.b16 %v354
        %v585 = vunpack.c.h.b16 %v354
        %v586 = vunpack.c.l.b16 %v355
        %v587 = vunpack.c.h.b16 %v355
        %v588 = vunpack.c.l.b16 %v356
        %v589 = vunpack.c.h.b16 %v356
        %v590 = vunpack.c.l.b16 %v357
        %v591 = vunpack.c.h.b16 %v357
        %v592 = vunpack.c.l.b16 %v358
        %v593 = vunpack.c.h.b16 %v358
        %v594 = vunpack.c.l.b16 %v359
        %v595 = vunpack.c.h.b16 %v359
        %v596 = vunpack.c.l.b16 %v360
        %v597 = vunpack.c.h.b16 %v360
        %v598 = vunpack.c.l.b16 %v361
        %v599 = vunpack.c.h.b16 %v361
        %v600 = vunpack.c.l.b16 %v362
        %v601 = vunpack.c.h.b16 %v362
        %v602 = vunpack.c.l.b16 %v363
        %v603 = vunpack.c.h.b16 %v363
        %v604 = vunpack.c.l.b16 %v364
        %v605 = vunpack.c.h.b16 %v364
        %v606 = vunpack.c.l.b16 %v365
        %v607 = vunpack.c.h.b16 %v365
        %v608 = vunpack.c.l.b16 %v366
        %v609 = vunpack.c.h.b16 %v366
        %v610 = vunpack.c.l.b16 %v367
        %v611 = vunpack.c.h.b16 %v367
        %v612 = vunpack.c.l.b16 %v368
        %v613 = vunpack.c.h.b16 %v368
        %v614 = vunpack.c.l.b16 %v369
        %v615 = vunpack.c.h.b16 %v369
        %v616 = vunpack.c.l.b16 %v370
        %v617 = vunpack.c.h.b16 %v370
        %v618 = vunpack.c.l.b16 %v371
        %v619 = vunpack.c.h.b16 %v371
        %v620 = vunpack.c.l.b16 %v372
        %v621 = vunpack.c.h.b16 %v372
        %v622 = vunpack.c.l.b16 %v373
        %v623 = vunpack.c.h.b16 %v373
        %v624 = vunpack.c.l.b16 %v374
        %v625 = vunpack.c.h.b16 %v374
        %v626 = vunpack.c.l.b16 %v375
        %v627 = vunpack.c.h.b16 %v375
        %v628 = vunpack.c.l.b16 %v376
        %v629 = vunpack.c.h.b16 %v376
        %v630 = vunpack.c.l.b16 %v377
        %v631 = vunpack.c.h.b16 %v377
        %v632 = vunpack.c.l.b16 %v378
        %v633 = vunpack.c.h.b16 %v378
        %v634 = vunpack.c.l.b16 %v379
        %v635 = vunpack.c.h.b16 %v379
        %v636 = vpack.c.b16 %v512, %v508
        %v637 = vpack.c.b16 %v513, %v509
        %v638 = vpack.c.b16 %v514, %v510
        %v639 = vpack.c.b16 %v515, %v511
        %v640 = vpack.c.b16 %v520, %v516
        %v641 = vpack.c.b16 %v521, %v517
        %v642 = vpack.c.b16 %v522, %v518
        %v643 = vpack.c.b16 %v523, %v519
        %v644 = vpack.c.b16 %v528, %v524
        %v645 = vpack.c.b16 %v529, %v525
        %v646 = vpack.c.b16 %v530, %v526
        %v647 = vpack.c.b16 %v531, %v527
        %v648 = vpack.c.b16 %v536, %v532
        %v649 = vpack.c.b16 %v537, %v533
        %v650 = vpack.c.b16 %v538, %v534
        %v651 = vpack.c.b16 %v539, %v535
        %v652 = vpack.c.b16 %v544, %v540
        %v653 = vpack.c.b16 %v545, %v541
        %v654 = vpack.c.b16 %v546, %v542
        %v655 = vpack.c.b16 %v547, %v543
        %v656 = vpack.c.b16 %v552, %v548
        %v657 = vpack.c.b16 %v553, %v549
        %v658 = vpack.c.b16 %v554, %v550
        %v659 = vpack.c.b16 %v555, %v551
        %v660 = vpack.c.b16 %v560, %v556
        %v661 = vpack.c.b16 %v561, %v557
        %v662 = vpack.c.b16 %v562, %v558
        %v663 = vpack.c.b16 %v563, %v559
        %v664 = vpack.c.b16 %v568, %v564
        %v665 = vpack.c.b16 %v569, %v565
        %v666 = vpack.c.b16 %v570, %v566
        %v667 = vpack.c.b16 %v571, %v567
        %v668 = vpack.c.b16 %v576, %v572
        %v669 = vpack.c.b16 %v577, %v573
        %v670 = vpack.c.b16 %v578, %v574
        %v671 = vpack.c.b16 %v579, %v575
        %v672 = vpack.c.b16 %v584, %v580
        %v673 = vpack.c.b16 %v585, %v581
        %v674 = vpack.c.b16 %v586, %v582
        %v675 = vpack.c.b16 %v587, %v583
        %v676 = vpack.c.b16 %v592, %v588
        %v677 = vpack.c.b16 %v593, %v589
        %v678 = vpack.c.b16 %v594, %v590
        %v679 = vpack.c.b16 %v595, %v591
        %v680 = vpack.c.b16 %v600, %v596
        %v681 = vpack.c.b16 %v601, %v597
        %v682 = vpack.c.b16 %v602, %v598
        %v683 = vpack.c.b16 %v603, %v599
        %v684 = vpack.c.b16 %v608, %v604
        %v685 = vpack.c.b16 %v609, %v605
        %v686 = vpack.c.b16 %v610, %v606
        %v687 = vpack.c.b16 %v611, %v607
        %v688 = vpack.c.b16 %v616, %v612
        %v689 = vpack.c.b16 %v617, %v613
        %v690 = vpack.c.b16 %v618, %v614
        %v691 = vpack.c.b16 %v619, %v615
        %v692 = vpack.c.b16 %v624, %v620
        %v693 = vpack.c.b16 %v625, %v621
        %v694 = vpack.c.b16 %v626, %v622
        %v695 = vpack.c.b16 %v627, %v623
        %v696 = vpack.c.b16 %v632, %v628
        %v697 = vpack.c.b16 %v633, %v629
        %v698 = vpack.c.b16 %v634, %v630
        %v699 = vpack.c.b16 %v635, %v631
        %v828 = vunpack.c.l.b16 %v380
        %v829 = vunpack.c.l.b16 %v381
        %v830 = vunpack.c.l.b16 %v382
        %v831 = vunpack.c.l.b16 %v383
        %v832 = vunpack.c.l.b16 %v384
        %v833 = vunpack.c.l.b16 %v385
        %v834 = vunpack.c.l.b16 %v386
        %v835 = vunpack.c.l.b16 %v387
        %v836 = vunpack.c.l.b16 %v388
        %v837 = vunpack.c.l.b16 %v389
        %v838 = vunpack.c.l.b16 %v390
        %v839 = vunpack.c.l.b16 %v391
        %v840 = vunpack.c.l.b16 %v392
        %v841 = vunpack.c.l.b16 %v393
        %v842 = vunpack.c.l.b16 %v394
        %v843 = vunpack.c.l.b16 %v395
        %v844 = vunpack.c.l.b16 %v396
        %v845 = vunpack.c.l.b16 %v397
        %v846 = vunpack.c.l.b16 %v398
        %v847 = vunpack.c.l.b16 %v399
        %v848 = vunpack.c.l.b16 %v400
        %v849 = vunpack.c.l.b16 %v401
        %v850 = vunpack.c.l.b16 %v402
        %v851 = vunpack.c.l.b16 %v403
        %v852 = vunpack.c.l.b16 %v404
        %v853 = vunpack.c.l.b16 %v405
        %v854 = vunpack.c.l.b16 %v406
        %v855 = vunpack.c.l.b16 %v407
        %v856 = vunpack.c.l.b16 %v408
        %v857 = vunpack.c.l.b16 %v409
        %v858 = vunpack.c.l.b16 %v410
        %v859 = vunpack.c.l.b16 %v411
        %v860 = vunpack.c.l.b16 %v412
        %v861 = vunpack.c.l.b16 %v413
        %v862 = vunpack.c.l.b16 %v414
        %v863 = vunpack.c.l.b16 %v415
        %v864 = vunpack.c.l.b16 %v416
        %v865 = vunpack.c.l.b16 %v417
        %v866 = vunpack.c.l.b16 %v418
        %v867 = vunpack.c.l.b16 %v419
        %v868 = vunpack.c.l.b16 %v420
        %v869 = vunpack.c.l.b16 %v421
        %v870 = vunpack.c.l.b16 %v422
        %v871 = vunpack.c.l.b16 %v423
        %v872 = vunpack.c.l.b16 %v424
        %v873 = vunpack.c.l.b16 %v425
        %v874 = vunpack.c.l.b16 %v426
        %v875 = vunpack.c.l.b16 %v427
        %v876 = vunpack.c.l.b16 %v428
        %v877 = vunpack.c.l.b16 %v429
        %v878 = vunpack.c.l.b16 %v430
        %v879 = vunpack.c.l.b16 %v431
        %v880 = vunpack.c.l.b16 %v432
        %v881 = vunpack.c.l.b16 %v433
        %v882 = vunpack.c.l.b16 %v434
        %v883 = vunpack.c.l.b16 %v435
        %v884 = vunpack.c.l.b16 %v436
        %v885 = vunpack.c.l.b16 %v437
        %v886 = vunpack.c.l.b16 %v438
        %v887 = vunpack.c.l.b16 %v439
        %v888 = vunpack.c.l.b16 %v440
        %v889 = vunpack.c.l.b16 %v441
        %v890 = vunpack.c.l.b16 %v442
        %v891 = vunpack.c.l.b16 %v443
        %v892 = vpack.c.b16 %v829, %v828
        %v893 = vpack.c.b16 %v831, %v830
        %v894 = vpack.c.b16 %v833, %v832
        %v895 = vpack.c.b16 %v835, %v834
        %v896 = vpack.c.b16 %v837, %v836
        %v897 = vpack.c.b16 %v839, %v838
        %v898 = vpack.c.b16 %v841, %v840
        %v899 = vpack.c.b16 %v843, %v842
        %v900 = vpack.c.b16 %v845, %v844
        %v901 = vpack.c.b16 %v847, %v846
        %v902 = vpack.c.b16 %v849, %v848
        %v903 = vpack.c.b16 %v851, %v850
        %v904 = vpack.c.b16 %v853, %v852
        %v905 = vpack.c.b16 %v855, %v854
        %v906 = vpack.c.b16 %v857, %v856
        %v907 = vpack.c.b16 %v859, %v858
        %v908 = vpack.c.b16 %v861, %v860
        %v909 = vpack.c.b16 %v863, %v862
        %v910 = vpack.c.b16 %v865, %v864
        %v911 = vpack.c.b16 %v867, %v866
        %v912 = vpack.c.b16 %v869, %v868
        %v913 = vpack.c.b16 %v871, %v870
        %v914 = vpack.c.b16 %v873, %v872
        %v915 = vpack.c.b16 %v875, %v874
        %v916 = vpack.c.b16 %v877, %v876
        %v917 = vpack.c.b16 %v879, %v878
        %v918 = vpack.c.b16 %v881, %v880
        %v919 = vpack.c.b16 %v883, %v882
        %v920 = vpack.c.b16 %v885, %v884
        %v921 = vpack.c.b16 %v887, %v886
        %v922 = vpack.c.b16 %v889, %v888
        %v923 = vpack.c.b16 %v891, %v890
        %956 = vmatprep.subr.bf16.mxu0 0
        %957 = vmatpush1.bf16.msra.mxu0 %v899
        %958 = vmatprep.subr.bf16.mxu0 0
        %959 = vmatpush1.bf16.msra.mxu0 %v898
        %960 = vmatprep.subr.bf16.mxu0 0
        %961 = vmatpush1.bf16.msra.mxu0 %v897
        %962 = vmatprep.subr.bf16.mxu0 0
        %963 = vmatpush1.bf16.msra.mxu0 %v896
        %964 = vmatprep.subr.bf16.mxu0 0
        %965 = vmatpush1.bf16.msra.mxu0 %v895
        %966 = vmatprep.subr.bf16.mxu0 0
        %967 = vmatpush1.bf16.msra.mxu0 %v894
        %968 = vmatprep.subr.bf16.mxu0 0
        %969 = vmatpush1.bf16.msra.mxu0 %v893
        %970 = vmatprep.subr.bf16.mxu0 0
        %971 = vmatpush1.bf16.msra.mxu0 %v892
        %972 = vmatprep.subr.bf16.mxu0 0
        %973 = vmatpush2.bf16.msra.mxu0 %v907
        %974 = vmatprep.subr.bf16.mxu0 0
        %975 = vmatpush2.bf16.msra.mxu0 %v906
        %976 = vmatprep.subr.bf16.mxu0 0
        %977 = vmatpush2.bf16.msra.mxu0 %v905
        %978 = vmatprep.subr.bf16.mxu0 0
        %979 = vmatpush2.bf16.msra.mxu0 %v904
        %980 = vmatprep.subr.bf16.mxu0 0
        %981 = vmatpush2.bf16.msra.mxu0 %v903
        %982 = vmatprep.subr.bf16.mxu0 0
        %983 = vmatpush2.bf16.msra.mxu0 %v902
        %984 = vmatprep.subr.bf16.mxu0 0
        %985 = vmatpush2.bf16.msra.mxu0 %v901
        %986 = vmatprep.subr.bf16.mxu0 0
        %987 = vmatpush2.bf16.msra.mxu0 %v900
        %988 = vmatprep.mubr.bf16.mxu0 %v637
        %989 = vmatmul.mubr.bf16.gmra.mxu0 %v636
        %v990 = vpop.f32.mrf.mxu0
        %v991 = vadd.f32 0.0, %v990
        %v992 = vpop.f32.mrf.mxu0
        %v993 = vpop.f32.mrf.mxu0
        %v994 = vadd.f32 0.0, %v993
        %v995 = vpop.f32.mrf.mxu0
        %996 = vmatprep.mubr.bf16.mxu0 %v641
        %997 = vmatmul.mubr.bf16.gmra.mxu0 %v640
        %v998 = vpop.f32.mrf.mxu0
        %v999 = vadd.f32 0.0, %v998
        %v1000 = vpop.f32.mrf.mxu0
        %v1001 = vpop.f32.mrf.mxu0
        %v1002 = vadd.f32 0.0, %v1001
        %v1003 = vpop.f32.mrf.mxu0
        %1004 = vmatprep.mubr.bf16.mxu0 %v645
        %1005 = vmatmul.mubr.bf16.gmra.mxu0 %v644
        %v1006 = vpop.f32.mrf.mxu0
        %v1007 = vadd.f32 0.0, %v1006
        %v1008 = vpop.f32.mrf.mxu0
        %v1009 = vpop.f32.mrf.mxu0
        %v1010 = vadd.f32 0.0, %v1009
        %v1011 = vpop.f32.mrf.mxu0
        %1012 = vmatprep.mubr.bf16.mxu0 %v649
        %1013 = vmatmul.mubr.bf16.gmra.mxu0 %v648
        %v1014 = vpop.f32.mrf.mxu0
        %v1015 = vadd.f32 0.0, %v1014
        %v1016 = vpop.f32.mrf.mxu0
        %v1017 = vpop.f32.mrf.mxu0
        %v1018 = vadd.f32 0.0, %v1017
        %v1019 = vpop.f32.mrf.mxu0
        %1020 = vmatprep.mubr.bf16.mxu0 %v653
        %1021 = vmatmul.mubr.bf16.gmra.mxu0 %v652
        %v1022 = vpop.f32.mrf.mxu0
        %v1023 = vadd.f32 0.0, %v1022
        %v1024 = vpop.f32.mrf.mxu0
        %v1025 = vpop.f32.mrf.mxu0
        %v1026 = vadd.f32 0.0, %v1025
        %v1027 = vpop.f32.mrf.mxu0
        %1028 = vmatprep.mubr.bf16.mxu0 %v657
        %1029 = vmatmul.mubr.bf16.gmra.mxu0 %v656
        %v1030 = vpop.f32.mrf.mxu0
        %v1031 = vadd.f32 0.0, %v1030
        %v1032 = vpop.f32.mrf.mxu0
        %v1033 = vpop.f32.mrf.mxu0
        %v1034 = vadd.f32 0.0, %v1033
        %v1035 = vpop.f32.mrf.mxu0
        %1036 = vmatprep.mubr.bf16.mxu0 %v661
        %1037 = vmatmul.mubr.bf16.gmra.mxu0 %v660
        %v1038 = vpop.f32.mrf.mxu0
        %v1039 = vadd.f32 0.0, %v1038
        %v1040 = vpop.f32.mrf.mxu0
        %v1041 = vpop.f32.mrf.mxu0
        %v1042 = vadd.f32 0.0, %v1041
        %v1043 = vpop.f32.mrf.mxu0
        %1044 = vmatprep.mubr.bf16.mxu0 %v665
        %1045 = vmatmul.mubr.bf16.gmra.mxu0 %v664
        %v1046 = vpop.f32.mrf.mxu0
        %v1047 = vadd.f32 0.0, %v1046
        %v1048 = vpop.f32.mrf.mxu0
        %v1049 = vpop.f32.mrf.mxu0
        %v1050 = vadd.f32 0.0, %v1049
        %v1051 = vpop.f32.mrf.mxu0
        %1052 = vmatprep.mubr.bf16.mxu0 %v669
        %1053 = vmatmul.mubr.bf16.gmra.mxu0 %v668
        %v1054 = vpop.f32.mrf.mxu0
        %v1055 = vadd.f32 0.0, %v1054
        %v1056 = vpop.f32.mrf.mxu0
        %v1057 = vpop.f32.mrf.mxu0
        %v1058 = vadd.f32 0.0, %v1057
        %v1059 = vpop.f32.mrf.mxu0
        %1060 = vmatprep.mubr.bf16.mxu0 %v673
        %1061 = vmatmul.mubr.bf16.gmra.mxu0 %v672
        %v1062 = vpop.f32.mrf.mxu0
        %v1063 = vadd.f32 0.0, %v1062
        %v1064 = vpop.f32.mrf.mxu0
        %v1065 = vpop.f32.mrf.mxu0
        %v1066 = vadd.f32 0.0, %v1065
        %v1067 = vpop.f32.mrf.mxu0
        %1068 = vmatprep.mubr.bf16.mxu0 %v677
        %1069 = vmatmul.mubr.bf16.gmra.mxu0 %v676
        %v1070 = vpop.f32.mrf.mxu0
        %v1071 = vadd.f32 0.0, %v1070
        %v1072 = vpop.f32.mrf.mxu0
        %v1073 = vpop.f32.mrf.mxu0
        %v1074 = vadd.f32 0.0, %v1073
        %v1075 = vpop.f32.mrf.mxu0
        %1076 = vmatprep.mubr.bf16.mxu0 %v681
        %1077 = vmatmul.mubr.bf16.gmra.mxu0 %v680
        %v1078 = vpop.f32.mrf.mxu0
        %v1079 = vadd.f32 0.0, %v1078
        %v1080 = vpop.f32.mrf.mxu0
        %v1081 = vpop.f32.mrf.mxu0
        %v1082 = vadd.f32 0.0, %v1081
        %v1083 = vpop.f32.mrf.mxu0
        %1084 = vmatprep.mubr.bf16.mxu0 %v685
        %1085 = vmatmul.mubr.bf16.gmra.mxu0 %v684
        %v1086 = vpop.f32.mrf.mxu0
        %v1087 = vadd.f32 0.0, %v1086
        %v1088 = vpop.f32.mrf.mxu0
        %v1089 = vpop.f32.mrf.mxu0
        %v1090 = vadd.f32 0.0, %v1089
        %v1091 = vpop.f32.mrf.mxu0
        %1092 = vmatprep.mubr.bf16.mxu0 %v689
        %1093 = vmatmul.mubr.bf16.gmra.mxu0 %v688
        %v1094 = vpop.f32.mrf.mxu0
        %v1095 = vadd.f32 0.0, %v1094
        %v1096 = vpop.f32.mrf.mxu0
        %v1097 = vpop.f32.mrf.mxu0
        %v1098 = vadd.f32 0.0, %v1097
        %v1099 = vpop.f32.mrf.mxu0
        %1100 = vmatprep.mubr.bf16.mxu0 %v693
        %1101 = vmatmul.mubr.bf16.gmra.mxu0 %v692
        %v1102 = vpop.f32.mrf.mxu0
        %v1103 = vadd.f32 0.0, %v1102
        %v1104 = vpop.f32.mrf.mxu0
        %v1105 = vpop.f32.mrf.mxu0
        %v1106 = vadd.f32 0.0, %v1105
        %v1107 = vpop.f32.mrf.mxu0
        %1108 = vmatprep.mubr.bf16.mxu0 %v697
        %1109 = vmatmul.mubr.bf16.gmra.mxu0 %v696
        %v1110 = vpop.f32.mrf.mxu0
        %v1111 = vadd.f32 0.0, %v1110
        %v1112 = vpop.f32.mrf.mxu0
        %v1113 = vpop.f32.mrf.mxu0
        %v1114 = vadd.f32 0.0, %v1113
        %v1115 = vpop.f32.mrf.mxu0
        %1116 = vdwg.mxu0
        %1117 = vmatprep.subr.bf16.mxu0 0
        %1118 = vmatpush1.bf16.msra.mxu0 %v915
        %1119 = vmatprep.subr.bf16.mxu0 0
        %1120 = vmatpush1.bf16.msra.mxu0 %v914
        %1121 = vmatprep.subr.bf16.mxu0 0
        %1122 = vmatpush1.bf16.msra.mxu0 %v913
        %1123 = vmatprep.subr.bf16.mxu0 0
        %1124 = vmatpush1.bf16.msra.mxu0 %v912
        %1125 = vmatprep.subr.bf16.mxu0 0
        %1126 = vmatpush1.bf16.msra.mxu0 %v911
        %1127 = vmatprep.subr.bf16.mxu0 0
        %1128 = vmatpush1.bf16.msra.mxu0 %v910
        %1129 = vmatprep.subr.bf16.mxu0 0
        %1130 = vmatpush1.bf16.msra.mxu0 %v909
        %1131 = vmatprep.subr.bf16.mxu0 0
        %1132 = vmatpush1.bf16.msra.mxu0 %v908
        %1133 = vmatprep.subr.bf16.mxu0 0
        %1134 = vmatpush2.bf16.msra.mxu0 %v923
        %1135 = vmatprep.subr.bf16.mxu0 0
        %1136 = vmatpush2.bf16.msra.mxu0 %v922
        %1137 = vmatprep.subr.bf16.mxu0 0
        %1138 = vmatpush2.bf16.msra.mxu0 %v921
        %1139 = vmatprep.subr.bf16.mxu0 0
        %1140 = vmatpush2.bf16.msra.mxu0 %v920
        %1141 = vmatprep.subr.bf16.mxu0 0
        %1142 = vmatpush2.bf16.msra.mxu0 %v919
        %1143 = vmatprep.subr.bf16.mxu0 0
        %1144 = vmatpush2.bf16.msra.mxu0 %v918
        %1145 = vmatprep.subr.bf16.mxu0 0
        %1146 = vmatpush2.bf16.msra.mxu0 %v917
        %1147 = vmatprep.subr.bf16.mxu0 0
        %1148 = vmatpush2.bf16.msra.mxu0 %v916
        %1149 = vmatprep.mubr.bf16.mxu0 %v639
        %1150 = vmatmul.mubr.bf16.gmra.mxu0 %v638
        %v1151 = vpop.f32.mrf.mxu0
        %v1152 = vadd.f32 %v991, %v1151
        %v1153 = vpop.f32.mrf.mxu0
        %v1154 = vpop.f32.mrf.mxu0
        %v1155 = vadd.f32 %v994, %v1154
        %v1156 = vpop.f32.mrf.mxu0
        %1157 = vmatprep.mubr.bf16.mxu0 %v643
        %1158 = vmatmul.mubr.bf16.gmra.mxu0 %v642
        %v1159 = vpop.f32.mrf.mxu0
        %v1160 = vadd.f32 %v999, %v1159
        %v1161 = vpop.f32.mrf.mxu0
        %v1162 = vpop.f32.mrf.mxu0
        %v1163 = vadd.f32 %v1002, %v1162
        %v1164 = vpop.f32.mrf.mxu0
        %1165 = vmatprep.mubr.bf16.mxu0 %v647
        %1166 = vmatmul.mubr.bf16.gmra.mxu0 %v646
        %v1167 = vpop.f32.mrf.mxu0
        %v1168 = vadd.f32 %v1007, %v1167
        %v1169 = vpop.f32.mrf.mxu0
        %v1170 = vpop.f32.mrf.mxu0
        %v1171 = vadd.f32 %v1010, %v1170
        %v1172 = vpop.f32.mrf.mxu0
        %1173 = vmatprep.mubr.bf16.mxu0 %v651
        %1174 = vmatmul.mubr.bf16.gmra.mxu0 %v650
        %v1175 = vpop.f32.mrf.mxu0
        %v1176 = vadd.f32 %v1015, %v1175
        %v1177 = vpop.f32.mrf.mxu0
        %v1178 = vpop.f32.mrf.mxu0
        %v1179 = vadd.f32 %v1018, %v1178
        %v1180 = vpop.f32.mrf.mxu0
        %1181 = vmatprep.mubr.bf16.mxu0 %v655
        %1182 = vmatmul.mubr.bf16.gmra.mxu0 %v654
        %v1183 = vpop.f32.mrf.mxu0
        %v1184 = vadd.f32 %v1023, %v1183
        %v1185 = vpop.f32.mrf.mxu0
        %v1186 = vpop.f32.mrf.mxu0
        %v1187 = vadd.f32 %v1026, %v1186
        %v1188 = vpop.f32.mrf.mxu0
        %1189 = vmatprep.mubr.bf16.mxu0 %v659
        %1190 = vmatmul.mubr.bf16.gmra.mxu0 %v658
        %v1191 = vpop.f32.mrf.mxu0
        %v1192 = vadd.f32 %v1031, %v1191
        %v1193 = vpop.f32.mrf.mxu0
        %v1194 = vpop.f32.mrf.mxu0
        %v1195 = vadd.f32 %v1034, %v1194
        %v1196 = vpop.f32.mrf.mxu0
        %1197 = vmatprep.mubr.bf16.mxu0 %v663
        %1198 = vmatmul.mubr.bf16.gmra.mxu0 %v662
        %v1199 = vpop.f32.mrf.mxu0
        %v1200 = vadd.f32 %v1039, %v1199
        %v1201 = vpop.f32.mrf.mxu0
        %v1202 = vpop.f32.mrf.mxu0
        %v1203 = vadd.f32 %v1042, %v1202
        %v1204 = vpop.f32.mrf.mxu0
        %1205 = vmatprep.mubr.bf16.mxu0 %v667
        %1206 = vmatmul.mubr.bf16.gmra.mxu0 %v666
        %v1207 = vpop.f32.mrf.mxu0
        %v1208 = vadd.f32 %v1047, %v1207
        %v1209 = vpop.f32.mrf.mxu0
        %v1210 = vpop.f32.mrf.mxu0
        %v1211 = vadd.f32 %v1050, %v1210
        %v1212 = vpop.f32.mrf.mxu0
        %1213 = vmatprep.mubr.bf16.mxu0 %v671
        %1214 = vmatmul.mubr.bf16.gmra.mxu0 %v670
        %v1215 = vpop.f32.mrf.mxu0
        %v1216 = vadd.f32 %v1055, %v1215
        %v1217 = vpop.f32.mrf.mxu0
        %v1218 = vpop.f32.mrf.mxu0
        %v1219 = vadd.f32 %v1058, %v1218
        %v1220 = vpop.f32.mrf.mxu0
        %1221 = vmatprep.mubr.bf16.mxu0 %v675
        %1222 = vmatmul.mubr.bf16.gmra.mxu0 %v674
        %v1223 = vpop.f32.mrf.mxu0
        %v1224 = vadd.f32 %v1063, %v1223
        %v1225 = vpop.f32.mrf.mxu0
        %v1226 = vpop.f32.mrf.mxu0
        %v1227 = vadd.f32 %v1066, %v1226
        %v1228 = vpop.f32.mrf.mxu0
        %1229 = vmatprep.mubr.bf16.mxu0 %v679
        %1230 = vmatmul.mubr.bf16.gmra.mxu0 %v678
        %v1231 = vpop.f32.mrf.mxu0
        %v1232 = vadd.f32 %v1071, %v1231
        %v1233 = vpop.f32.mrf.mxu0
        %v1234 = vpop.f32.mrf.mxu0
        %v1235 = vadd.f32 %v1074, %v1234
        %v1236 = vpop.f32.mrf.mxu0
        %1237 = vmatprep.mubr.bf16.mxu0 %v683
        %1238 = vmatmul.mubr.bf16.gmra.mxu0 %v682
        %v1239 = vpop.f32.mrf.mxu0
        %v1240 = vadd.f32 %v1079, %v1239
        %v1241 = vpop.f32.mrf.mxu0
        %v1242 = vpop.f32.mrf.mxu0
        %v1243 = vadd.f32 %v1082, %v1242
        %v1244 = vpop.f32.mrf.mxu0
        %1245 = vmatprep.mubr.bf16.mxu0 %v687
        %1246 = vmatmul.mubr.bf16.gmra.mxu0 %v686
        %v1247 = vpop.f32.mrf.mxu0
        %v1248 = vadd.f32 %v1087, %v1247
        %v1249 = vpop.f32.mrf.mxu0
        %v1250 = vpop.f32.mrf.mxu0
        %v1251 = vadd.f32 %v1090, %v1250
        %v1252 = vpop.f32.mrf.mxu0
        %1253 = vmatprep.mubr.bf16.mxu0 %v691
        %1254 = vmatmul.mubr.bf16.gmra.mxu0 %v690
        %v1255 = vpop.f32.mrf.mxu0
        %v1256 = vadd.f32 %v1095, %v1255
        %v1257 = vpop.f32.mrf.mxu0
        %v1258 = vpop.f32.mrf.mxu0
        %v1259 = vadd.f32 %v1098, %v1258
        %v1260 = vpop.f32.mrf.mxu0
        %1261 = vmatprep.mubr.bf16.mxu0 %v695
        %1262 = vmatmul.mubr.bf16.gmra.mxu0 %v694
        %v1263 = vpop.f32.mrf.mxu0
        %v1264 = vadd.f32 %v1103, %v1263
        %v1265 = vpop.f32.mrf.mxu0
        %v1266 = vpop.f32.mrf.mxu0
        %v1267 = vadd.f32 %v1106, %v1266
        %v1268 = vpop.f32.mrf.mxu0
        %1269 = vmatprep.mubr.bf16.mxu0 %v699
        %1270 = vmatmul.mubr.bf16.gmra.mxu0 %v698
        %v1271 = vpop.f32.mrf.mxu0
        %v1272 = vadd.f32 %v1111, %v1271
        %v1273 = vpop.f32.mrf.mxu0
        %v1274 = vpop.f32.mrf.mxu0
        %v1275 = vadd.f32 %v1114, %v1274
        %v1276 = vpop.f32.mrf.mxu0
        %1277 = vdwg.mxu0
        %v1278 = vadd.f32 %v284, %v1152
        %v1279 = vadd.f32 %v285, %v1155
        %v1280 = vadd.f32 %v286, %v1160
        %v1281 = vadd.f32 %v287, %v1163
        %v1282 = vadd.f32 %v288, %v1168
        %v1283 = vadd.f32 %v289, %v1171
        %v1284 = vadd.f32 %v290, %v1176
        %v1285 = vadd.f32 %v291, %v1179
        %v1286 = vadd.f32 %v292, %v1184
        %v1287 = vadd.f32 %v293, %v1187
        %v1288 = vadd.f32 %v294, %v1192
        %v1289 = vadd.f32 %v295, %v1195
        %v1290 = vadd.f32 %v296, %v1200
        %v1291 = vadd.f32 %v297, %v1203
        %v1292 = vadd.f32 %v298, %v1208
        %v1293 = vadd.f32 %v299, %v1211
        %v1294 = vadd.f32 %v300, %v1216
        %v1295 = vadd.f32 %v301, %v1219
        %v1296 = vadd.f32 %v302, %v1224
        %v1297 = vadd.f32 %v303, %v1227
        %v1298 = vadd.f32 %v304, %v1232
        %v1299 = vadd.f32 %v305, %v1235
        %v1300 = vadd.f32 %v306, %v1240
        %v1301 = vadd.f32 %v307, %v1243
        %v1302 = vadd.f32 %v308, %v1248
        %v1303 = vadd.f32 %v309, %v1251
        %v1304 = vadd.f32 %v310, %v1256
        %v1305 = vadd.f32 %v311, %v1259
        %v1306 = vadd.f32 %v312, %v1264
        %v1307 = vadd.f32 %v313, %v1267
        %v1308 = vadd.f32 %v314, %v1272
        %v1309 = vadd.f32 %v315, %v1275
        %1310 = vst [vmem:[#allocation2] sm:$0xff] %v1278
        %1311 = vst [vmem:[#allocation2 + $0x8] sm:$0xff] %v1279
        %1312 = vst [vmem:[#allocation2 + $0x10] sm:$0xff] %v1280
        %1313 = vst [vmem:[#allocation2 + $0x18] sm:$0xff] %v1281
        %1314 = vst [vmem:[#allocation2 + $0x20] sm:$0xff] %v1282
        %1315 = vst [vmem:[#allocation2 + $0x28] sm:$0xff] %v1283
        %1316 = vst [vmem:[#allocation2 + $0x30] sm:$0xff] %v1284
        %1317 = vst [vmem:[#allocation2 + $0x38] sm:$0xff] %v1285
        %1318 = vst [vmem:[#allocation2 + $0x40] sm:$0xff] %v1286
        %1319 = vst [vmem:[#allocation2 + $0x48] sm:$0xff] %v1287
        %1320 = vst [vmem:[#allocation2 + $0x50] sm:$0xff] %v1288
        %1321 = vst [vmem:[#allocation2 + $0x58] sm:$0xff] %v1289
        %1322 = vst [vmem:[#allocation2 + $0x60] sm:$0xff] %v1290
        %1323 = vst [vmem:[#allocation2 + $0x68] sm:$0xff] %v1291
        %1324 = vst [vmem:[#allocation2 + $0x70] sm:$0xff] %v1292
        %1325 = vst [vmem:[#allocation2 + $0x78] sm:$0xff] %v1293
        %1326 = vst [vmem:[#allocation2 + $0x80] sm:$0xff] %v1294
        %1327 = vst [vmem:[#allocation2 + $0x88] sm:$0xff] %v1295
        %1328 = vst [vmem:[#allocation2 + $0x90] sm:$0xff] %v1296
        %1329 = vst [vmem:[#allocation2 + $0x98] sm:$0xff] %v1297
        %1330 = vst [vmem:[#allocation2 + $0xa0] sm:$0xff] %v1298
        %1331 = vst [vmem:[#allocation2 + $0xa8] sm:$0xff] %v1299
        %1332 = vst [vmem:[#allocation2 + $0xb0] sm:$0xff] %v1300
        %1333 = vst [vmem:[#allocation2 + $0xb8] sm:$0xff] %v1301
        %1334 = vst [vmem:[#allocation2 + $0xc0] sm:$0xff] %v1302
        %1335 = vst [vmem:[#allocation2 + $0xc8] sm:$0xff] %v1303
        %1336 = vst [vmem:[#allocation2 + $0xd0] sm:$0xff] %v1304
        %1337 = vst [vmem:[#allocation2 + $0xd8] sm:$0xff] %v1305
        %1338 = vst [vmem:[#allocation2 + $0xe0] sm:$0xff] %v1306
        %1339 = vst [vmem:[#allocation2 + $0xe8] sm:$0xff] %v1307
        %1340 = vst [vmem:[#allocation2 + $0xf0] sm:$0xff] %v1308
        %1341 = vst [vmem:[#allocation2 + $0xf8] sm:$0xff] %v1309
        // Predicated region
        $region49: #{tpu_custom_call.1} parent=31 // pred_check
          %p1342 = pneg %p248
        $region50: #{tpu_custom_call.1} parent=31 // pred_check_branch
          %1344 = sbr.rel (%p1342) target = $region52
        $region51: #{tpu_custom_call.1} parent=31 // pred_region
          %v1345 = vld [vmem:[#allocation2] sm:$0xff]
          %v1346 = vld [vmem:[#allocation2 + $0x8] sm:$0xff]
          %v1347 = vld [vmem:[#allocation2 + $0x10] sm:$0xff]
          %v1348 = vld [vmem:[#allocation2 + $0x18] sm:$0xff]
          %v1349 = vld [vmem:[#allocation2 + $0x20] sm:$0xff]
          %v1350 = vld [vmem:[#allocation2 + $0x28] sm:$0xff]
          %v1351 = vld [vmem:[#allocation2 + $0x30] sm:$0xff]
          %v1352 = vld [vmem:[#allocation2 + $0x38] sm:$0xff]
          %v1353 = vld [vmem:[#allocation2 + $0x40] sm:$0xff]
          %v1354 = vld [vmem:[#allocation2 + $0x48] sm:$0xff]
          %v1355 = vld [vmem:[#allocation2 + $0x50] sm:$0xff]
          %v1356 = vld [vmem:[#allocation2 + $0x58] sm:$0xff]
          %v1357 = vld [vmem:[#allocation2 + $0x60] sm:$0xff]
          %v1358 = vld [vmem:[#allocation2 + $0x68] sm:$0xff]
          %v1359 = vld [vmem:[#allocation2 + $0x70] sm:$0xff]
          %v1360 = vld [vmem:[#allocation2 + $0x78] sm:$0xff]
          %v1361 = vld [vmem:[#allocation2 + $0x80] sm:$0xff]
          %v1362 = vld [vmem:[#allocation2 + $0x88] sm:$0xff]
          %v1363 = vld [vmem:[#allocation2 + $0x90] sm:$0xff]
          %v1364 = vld [vmem:[#allocation2 + $0x98] sm:$0xff]
          %v1365 = vld [vmem:[#allocation2 + $0xa0] sm:$0xff]
          %v1366 = vld [vmem:[#allocation2 + $0xa8] sm:$0xff]
          %v1367 = vld [vmem:[#allocation2 + $0xb0] sm:$0xff]
          %v1368 = vld [vmem:[#allocation2 + $0xb8] sm:$0xff]
          %v1369 = vld [vmem:[#allocation2 + $0xc0] sm:$0xff]
          %v1370 = vld [vmem:[#allocation2 + $0xc8] sm:$0xff]
          %v1371 = vld [vmem:[#allocation2 + $0xd0] sm:$0xff]
          %v1372 = vld [vmem:[#allocation2 + $0xd8] sm:$0xff]
          %v1373 = vld [vmem:[#allocation2 + $0xe0] sm:$0xff]
          %v1374 = vld [vmem:[#allocation2 + $0xe8] sm:$0xff]
          %v1375 = vld [vmem:[#allocation2 + $0xf0] sm:$0xff]
          %v1376 = vld [vmem:[#allocation2 + $0xf8] sm:$0xff]
          %v1377 = vpack.c.bf16 %v1346, %v1345
          %v1378 = vpack.c.bf16 %v1348, %v1347
          %v1379 = vpack.c.bf16 %v1350, %v1349
          %v1380 = vpack.c.bf16 %v1352, %v1351
          %v1381 = vpack.c.bf16 %v1354, %v1353
          %v1382 = vpack.c.bf16 %v1356, %v1355
          %v1383 = vpack.c.bf16 %v1358, %v1357
          %v1384 = vpack.c.bf16 %v1360, %v1359
          %v1385 = vpack.c.bf16 %v1362, %v1361
          %v1386 = vpack.c.bf16 %v1364, %v1363
          %v1387 = vpack.c.bf16 %v1366, %v1365
          %v1388 = vpack.c.bf16 %v1368, %v1367
          %v1389 = vpack.c.bf16 %v1370, %v1369
          %v1390 = vpack.c.bf16 %v1372, %v1371
          %v1391 = vpack.c.bf16 %v1374, %v1373
          %v1392 = vpack.c.bf16 %v1376, %v1375
          %v1393 = vld [vmem:[#allocation8] sm:$0xf]
          %v1394 = vld [vmem:[#allocation8 + $0x4] sm:$0xf]
          %v1395 = vld [vmem:[#allocation8 + $0x8] sm:$0xf]
          %v1396 = vld [vmem:[#allocation8 + $0xc] sm:$0xf]
          %v1397 = vld [vmem:[#allocation8 + $0x10] sm:$0xf]
          %v1398 = vld [vmem:[#allocation8 + $0x14] sm:$0xf]
          %v1399 = vld [vmem:[#allocation8 + $0x18] sm:$0xf]
          %v1400 = vld [vmem:[#allocation8 + $0x1c] sm:$0xf]
          %v1401 = vld [vmem:[#allocation8 + $0x20] sm:$0xf]
          %v1402 = vld [vmem:[#allocation8 + $0x24] sm:$0xf]
          %v1403 = vld [vmem:[#allocation8 + $0x28] sm:$0xf]
          %v1404 = vld [vmem:[#allocation8 + $0x2c] sm:$0xf]
          %v1405 = vld [vmem:[#allocation8 + $0x30] sm:$0xf]
          %v1406 = vld [vmem:[#allocation8 + $0x34] sm:$0xf]
          %v1407 = vld [vmem:[#allocation8 + $0x38] sm:$0xf]
          %v1408 = vld [vmem:[#allocation8 + $0x3c] sm:$0xf]
          %v1425 = vunpack.c.l.b16 %v1393
          %v1426 = vunpack.c.l.b16 %v1394
          %v1427 = vunpack.c.l.b16 %v1395
          %v1428 = vunpack.c.l.b16 %v1396
          %v1429 = vunpack.c.l.b16 %v1397
          %v1430 = vunpack.c.l.b16 %v1398
          %v1431 = vunpack.c.l.b16 %v1399
          %v1432 = vunpack.c.l.b16 %v1400
          %v1433 = vunpack.c.l.b16 %v1401
          %v1434 = vunpack.c.l.b16 %v1402
          %v1435 = vunpack.c.l.b16 %v1403
          %v1436 = vunpack.c.l.b16 %v1404
          %v1437 = vunpack.c.l.b16 %v1405
          %v1438 = vunpack.c.l.b16 %v1406
          %v1439 = vunpack.c.l.b16 %v1407
          %v1440 = vunpack.c.l.b16 %v1408
          %v1441 = vpack.c.b16 %v1426, %v1425
          %v1442 = vpack.c.b16 %v1428, %v1427
          %v1443 = vpack.c.b16 %v1430, %v1429
          %v1444 = vpack.c.b16 %v1432, %v1431
          %v1445 = vpack.c.b16 %v1434, %v1433
          %v1446 = vpack.c.b16 %v1436, %v1435
          %v1447 = vpack.c.b16 %v1438, %v1437
          %v1448 = vpack.c.b16 %v1440, %v1439
          %1457 = vmatprep.subr.bf16.mxu0 0
          %1458 = vmatpush1.bf16.msra.mxu0 %v1448
          %1459 = vmatprep.subr.bf16.mxu0 0
          %1460 = vmatpush1.bf16.msra.mxu0 %v1447
          %1461 = vmatprep.subr.bf16.mxu0 0
          %1462 = vmatpush1.bf16.msra.mxu0 %v1446
          %1463 = vmatprep.subr.bf16.mxu0 0
          %1464 = vmatpush1.bf16.msra.mxu0 %v1445
          %1465 = vmatprep.subr.bf16.mxu0 0
          %1466 = vmatpush1.bf16.msra.mxu0 %v1444
          %1467 = vmatprep.subr.bf16.mxu0 0
          %1468 = vmatpush1.bf16.msra.mxu0 %v1443
          %1469 = vmatprep.subr.bf16.mxu0 0
          %1470 = vmatpush1.bf16.msra.mxu0 %v1442
          %1471 = vmatprep.subr.bf16.mxu0 0
          %1472 = vmatpush1.bf16.msra.mxu0 %v1441
          %1473 = vmatprep.subr.bf16.mxu0 0
          %1474 = vmatpush2.bf16.msra.mxu0 0
          %1475 = vmatprep.subr.bf16.mxu0 0
          %1476 = vmatpush2.bf16.msra.mxu0 0
          %1477 = vmatprep.subr.bf16.mxu0 0
          %1478 = vmatpush2.bf16.msra.mxu0 0
          %1479 = vmatprep.subr.bf16.mxu0 0
          %1480 = vmatpush2.bf16.msra.mxu0 0
          %1481 = vmatprep.subr.bf16.mxu0 0
          %1482 = vmatpush2.bf16.msra.mxu0 0
          %1483 = vmatprep.subr.bf16.mxu0 0
          %1484 = vmatpush2.bf16.msra.mxu0 0
          %1485 = vmatprep.subr.bf16.mxu0 0
          %1486 = vmatpush2.bf16.msra.mxu0 0
          %1487 = vmatprep.subr.bf16.mxu0 0
          %1488 = vmatpush2.bf16.msra.mxu0 0
          %1489 = vmatprep.mubr.bf16.mxu0 0
          %1490 = vmatmul.mubr.bf16.gmra.mxu0 %v1377
          %v1491 = vpop.f32.mrf.mxu0
          %v1492 = vadd.f32 0.0, %v1491
          %v1493 = vpop.f32.mrf.mxu0
          %v1494 = vpop.f32.mrf.mxu0
          %v1495 = vadd.f32 0.0, %v1494
          %v1496 = vpop.f32.mrf.mxu0
          %1497 = vmatprep.mubr.bf16.mxu0 0
          %1498 = vmatmul.mubr.bf16.gmra.mxu0 %v1378
          %v1499 = vpop.f32.mrf.mxu0
          %v1500 = vadd.f32 0.0, %v1499
          %v1501 = vpop.f32.mrf.mxu0
          %v1502 = vpop.f32.mrf.mxu0
          %v1503 = vadd.f32 0.0, %v1502
          %v1504 = vpop.f32.mrf.mxu0
          %1505 = vmatprep.mubr.bf16.mxu0 0
          %1506 = vmatmul.mubr.bf16.gmra.mxu0 %v1379
          %v1507 = vpop.f32.mrf.mxu0
          %v1508 = vadd.f32 0.0, %v1507
          %v1509 = vpop.f32.mrf.mxu0
          %v1510 = vpop.f32.mrf.mxu0
          %v1511 = vadd.f32 0.0, %v1510
          %v1512 = vpop.f32.mrf.mxu0
          %1513 = vmatprep.mubr.bf16.mxu0 0
          %1514 = vmatmul.mubr.bf16.gmra.mxu0 %v1380
          %v1515 = vpop.f32.mrf.mxu0
          %v1516 = vadd.f32 0.0, %v1515
          %v1517 = vpop.f32.mrf.mxu0
          %v1518 = vpop.f32.mrf.mxu0
          %v1519 = vadd.f32 0.0, %v1518
          %v1520 = vpop.f32.mrf.mxu0
          %1521 = vmatprep.mubr.bf16.mxu0 0
          %1522 = vmatmul.mubr.bf16.gmra.mxu0 %v1381
          %v1523 = vpop.f32.mrf.mxu0
          %v1524 = vadd.f32 0.0, %v1523
          %v1525 = vpop.f32.mrf.mxu0
          %v1526 = vpop.f32.mrf.mxu0
          %v1527 = vadd.f32 0.0, %v1526
          %v1528 = vpop.f32.mrf.mxu0
          %1529 = vmatprep.mubr.bf16.mxu0 0
          %1530 = vmatmul.mubr.bf16.gmra.mxu0 %v1382
          %v1531 = vpop.f32.mrf.mxu0
          %v1532 = vadd.f32 0.0, %v1531
          %v1533 = vpop.f32.mrf.mxu0
          %v1534 = vpop.f32.mrf.mxu0
          %v1535 = vadd.f32 0.0, %v1534
          %v1536 = vpop.f32.mrf.mxu0
          %1537 = vmatprep.mubr.bf16.mxu0 0
          %1538 = vmatmul.mubr.bf16.gmra.mxu0 %v1383
          %v1539 = vpop.f32.mrf.mxu0
          %v1540 = vadd.f32 0.0, %v1539
          %v1541 = vpop.f32.mrf.mxu0
          %v1542 = vpop.f32.mrf.mxu0
          %v1543 = vadd.f32 0.0, %v1542
          %v1544 = vpop.f32.mrf.mxu0
          %1545 = vmatprep.mubr.bf16.mxu0 0
          %1546 = vmatmul.mubr.bf16.gmra.mxu0 %v1384
          %v1547 = vpop.f32.mrf.mxu0
          %v1548 = vadd.f32 0.0, %v1547
          %v1549 = vpop.f32.mrf.mxu0
          %v1550 = vpop.f32.mrf.mxu0
          %v1551 = vadd.f32 0.0, %v1550
          %v1552 = vpop.f32.mrf.mxu0
          %1553 = vmatprep.mubr.bf16.mxu0 0
          %1554 = vmatmul.mubr.bf16.gmra.mxu0 %v1385
          %v1555 = vpop.f32.mrf.mxu0
          %v1556 = vadd.f32 0.0, %v1555
          %v1557 = vpop.f32.mrf.mxu0
          %v1558 = vpop.f32.mrf.mxu0
          %v1559 = vadd.f32 0.0, %v1558
          %v1560 = vpop.f32.mrf.mxu0
          %1561 = vmatprep.mubr.bf16.mxu0 0
          %1562 = vmatmul.mubr.bf16.gmra.mxu0 %v1386
          %v1563 = vpop.f32.mrf.mxu0
          %v1564 = vadd.f32 0.0, %v1563
          %v1565 = vpop.f32.mrf.mxu0
          %v1566 = vpop.f32.mrf.mxu0
          %v1567 = vadd.f32 0.0, %v1566
          %v1568 = vpop.f32.mrf.mxu0
          %1569 = vmatprep.mubr.bf16.mxu0 0
          %1570 = vmatmul.mubr.bf16.gmra.mxu0 %v1387
          %v1571 = vpop.f32.mrf.mxu0
          %v1572 = vadd.f32 0.0, %v1571
          %v1573 = vpop.f32.mrf.mxu0
          %v1574 = vpop.f32.mrf.mxu0
          %v1575 = vadd.f32 0.0, %v1574
          %v1576 = vpop.f32.mrf.mxu0
          %1577 = vmatprep.mubr.bf16.mxu0 0
          %1578 = vmatmul.mubr.bf16.gmra.mxu0 %v1388
          %v1579 = vpop.f32.mrf.mxu0
          %v1580 = vadd.f32 0.0, %v1579
          %v1581 = vpop.f32.mrf.mxu0
          %v1582 = vpop.f32.mrf.mxu0
          %v1583 = vadd.f32 0.0, %v1582
          %v1584 = vpop.f32.mrf.mxu0
          %1585 = vmatprep.mubr.bf16.mxu0 0
          %1586 = vmatmul.mubr.bf16.gmra.mxu0 %v1389
          %v1587 = vpop.f32.mrf.mxu0
          %v1588 = vadd.f32 0.0, %v1587
          %v1589 = vpop.f32.mrf.mxu0
          %v1590 = vpop.f32.mrf.mxu0
          %v1591 = vadd.f32 0.0, %v1590
          %v1592 = vpop.f32.mrf.mxu0
          %1593 = vmatprep.mubr.bf16.mxu0 0
          %1594 = vmatmul.mubr.bf16.gmra.mxu0 %v1390
          %v1595 = vpop.f32.mrf.mxu0
          %v1596 = vadd.f32 0.0, %v1595
          %v1597 = vpop.f32.mrf.mxu0
          %v1598 = vpop.f32.mrf.mxu0
          %v1599 = vadd.f32 0.0, %v1598
          %v1600 = vpop.f32.mrf.mxu0
          %1601 = vmatprep.mubr.bf16.mxu0 0
          %1602 = vmatmul.mubr.bf16.gmra.mxu0 %v1391
          %v1603 = vpop.f32.mrf.mxu0
          %v1604 = vadd.f32 0.0, %v1603
          %v1605 = vpop.f32.mrf.mxu0
          %v1606 = vpop.f32.mrf.mxu0
          %v1607 = vadd.f32 0.0, %v1606
          %v1608 = vpop.f32.mrf.mxu0
          %1609 = vmatprep.mubr.bf16.mxu0 0
          %1610 = vmatmul.mubr.bf16.gmra.mxu0 %v1392
          %v1611 = vpop.f32.mrf.mxu0
          %v1612 = vadd.f32 0.0, %v1611
          %v1613 = vpop.f32.mrf.mxu0
          %v1614 = vpop.f32.mrf.mxu0
          %v1615 = vadd.f32 0.0, %v1614
          %v1616 = vpop.f32.mrf.mxu0
          %1617 = vdwg.mxu0
          %1618 = vst [vmem:[%s242] sm:$0xff] %v1492
          %1619 = vst [vmem:[%s242 + $0x8] sm:$0xff] %v1495
          %1620 = vst [vmem:[%s242 + $0x10] sm:$0xff] %v1500
          %1621 = vst [vmem:[%s242 + $0x18] sm:$0xff] %v1503
          %1622 = vst [vmem:[%s242 + $0x20] sm:$0xff] %v1508
          %1623 = vst [vmem:[%s242 + $0x28] sm:$0xff] %v1511
          %1624 = vst [vmem:[%s242 + $0x30] sm:$0xff] %v1516
          %1625 = vst [vmem:[%s242 + $0x38] sm:$0xff] %v1519
          %1626 = vst [vmem:[%s242 + $0x40] sm:$0xff] %v1524
          %1627 = vst [vmem:[%s242 + $0x48] sm:$0xff] %v1527
          %1628 = vst [vmem:[%s242 + $0x50] sm:$0xff] %v1532
          %1629 = vst [vmem:[%s242 + $0x58] sm:$0xff] %v1535
          %1630 = vst [vmem:[%s242 + $0x60] sm:$0xff] %v1540
          %1631 = vst [vmem:[%s242 + $0x68] sm:$0xff] %v1543
          %1632 = vst [vmem:[%s242 + $0x70] sm:$0xff] %v1548
          %1633 = vst [vmem:[%s242 + $0x78] sm:$0xff] %v1551
          %1634 = vst [vmem:[%s242 + $0x80] sm:$0xff] %v1556
          %1635 = vst [vmem:[%s242 + $0x88] sm:$0xff] %v1559
          %1636 = vst [vmem:[%s242 + $0x90] sm:$0xff] %v1564
          %1637 = vst [vmem:[%s242 + $0x98] sm:$0xff] %v1567
          %1638 = vst [vmem:[%s242 + $0xa0] sm:$0xff] %v1572
          %1639 = vst [vmem:[%s242 + $0xa8] sm:$0xff] %v1575
          %1640 = vst [vmem:[%s242 + $0xb0] sm:$0xff] %v1580
          %1641 = vst [vmem:[%s242 + $0xb8] sm:$0xff] %v1583
          %1642 = vst [vmem:[%s242 + $0xc0] sm:$0xff] %v1588
          %1643 = vst [vmem:[%s242 + $0xc8] sm:$0xff] %v1591
          %1644 = vst [vmem:[%s242 + $0xd0] sm:$0xff] %v1596
          %1645 = vst [vmem:[%s242 + $0xd8] sm:$0xff] %v1599
          %1646 = vst [vmem:[%s242 + $0xe0] sm:$0xff] %v1604
          %1647 = vst [vmem:[%s242 + $0xe8] sm:$0xff] %v1607
          %1648 = vst [vmem:[%s242 + $0xf0] sm:$0xff] %v1612
          %1649 = vst [vmem:[%s242 + $0xf8] sm:$0xff] %v1615
        $region52: #{tpu_custom_call.1} parent=31 // pred_fallthru
          _
        %s1650 = sand.u32 %s116, 1
        %s1651 = scalar_lea.sflag [#allocation5], %s1650
        %s1652 = sand.u32 %s116, 1
        %s1653 = smul.addr %s1652, 256
        %s1654 = scalar_lea.vmem [#allocation9], %s1653
        // Predicated region
        $region53: #{tpu_custom_call.1} parent=31 // pred_check
          %p1655 = pneg %p126
        $region54: #{tpu_custom_call.1} parent=31 // pred_check_branch
          %1657 = sbr.rel (%p1655) target = $region56
        $region55: #{tpu_custom_call.1} parent=31 // pred_region
          %s1658 = smul.u32 32, %s25
          %s1660 = ssub.s32 4096, 4096
          %1661 = vsyncadd %s1651, %s1660
          %s1662 = smul.addr %s1658, 128
          %s1663 = scalar_lea.hbm %s3, %s1662
          %s1664 = sshll.u32 %s1654, 4
          %s1665 = int_to_ptr.vmem [resolvable:$true] %s1664
          %1670 = dma.vmem_to_hbm [thread:$0]  %s1665, 4096, %s1663, %s1651, 128, 128, 8
        $region56: #{tpu_custom_call.1} parent=31 // pred_fallthru
          _
      $region32: #{tpu_custom_call.1} parent=5 // pred_fallthru
        _
      %p1671 = scmp.le.s32.totalorder 2, %s16
      // Predicated region
      $region57: #{tpu_custom_call.1} parent=5 // pred_check
        %p1672 = pneg %p1671
      $region58: #{tpu_custom_call.1} parent=5 // pred_check_branch
        %1674 = sbr.rel (%p1672) target = $region60
      $region59: #{tpu_custom_call.1} parent=5 // pred_region
        %s1675 = ssub.s32 %s16, 2
        // Predicated region
        $region61: #{tpu_custom_call.1} parent=59 // pred_check
          %p1676 = pneg %p132
        $region62: #{tpu_custom_call.1} parent=59 // pred_check_branch
          %1678 = sbr.rel (%p1676) target = $region64
        $region63: #{tpu_custom_call.1} parent=59 // pred_region
          %s1679 = sand.u32 %s117, 1
          %s1680 = scalar_lea.sflag [#allocation5], %s1679
          %s1681 = sand.u32 %s117, 1
          %s1682 = smul.addr %s1681, 256
          %s1683 = scalar_lea.vmem [#allocation9], %s1682
          %1684 = dma.done %s1680, 4096
        $region64: #{tpu_custom_call.1} parent=59 // pred_fallthru
          _
      $region60: #{tpu_custom_call.1} parent=5 // pred_fallthru
        _
    $region6: #{tpu_custom_call.1} parent=1 // loop_footer
      %s20 = sadd.s32 1, %s16
    $region7: #{tpu_custom_call.1} parent=1 // loop_footer_branch
      %15 = sbr.rel target = $region3
    $region8: #{tpu_custom_call.1} parent=1 // loop_exit
      _
    %1685 = vsyncpa [#allocation4], 1
    %s1686 = scalar_lea.sflag [#allocation4], 1
    %1687 = vsyncpa %s1686, 1
    %1688 = vsyncpa [#allocation7], 1
    %1689 = vsyncpa [#allocation5], 1
    %s1690 = scalar_lea.sflag [#allocation5], 1
    %1691 = vsyncpa %s1690, 1

</llo_original>
